<compile_context>
chip_gen: v7x
topology: tpu7x:2x2x1
jax: 0.10.0
libtpu: 0.0.40
codegen_flags: <defaults>
</compile_context>

<pallas_src>
import math

import jax
import jax.numpy as jnp
from jax import lax
from jax.experimental import pallas as pl
from jax.experimental.pallas import tpu as pltpu  # noqa: F401  (kept for scaled-up variants)

# ----------------------------- config -----------------------------
B = 2            # batch
T = 16           # context_len
D = 64           # num_dims
H = 4            # num_heads
KVH = 2          # num_kv_heads
HD = D // H      # head_dim = 16
FFN_HID = 128    # ffn_hidden_dims
N_REP = H // KVH
RMS_EPS = 1e-6
ROPE_THETA = 10000.0


# ----------------------------- fused Block kernel -----------------------------
def _block_kernel(x_ref, wqkv_ref, wo_ref, w13_ref, w2_ref,
                  g_attn_ref, g_ffn_ref, cos_ref, sin_ref, o_ref):
    """Whole transformer block on a fully VMEM-resident working set.

    x_ref:    (B*T, D)
    wqkv_ref: (D, D + 2*KVH*HD) = (64, 128)   [q | k | v]
    wo_ref:   (D, D)
    w13_ref:  (D, 2*FFN_HID)    = (64, 256)   [w1 | w3]
    w2_ref:   (FFN_HID, D)
    g_*_ref:  (1, D)
    cos_ref, sin_ref: (T, HD)
    o_ref:    (B*T, D)
    """
    x = x_ref[...]                                        # (B*T, D) f32

    # ---- RMSNorm (attention branch) -- reduce->XLU, rsqrt->EUP, free under MXU ----
    ms = jnp.mean(x * x, axis=-1, keepdims=True)
    xn = g_attn_ref[...] * (x * lax.rsqrt(ms + RMS_EPS))

    # ---- fused QKV projection: one lane-dense (32,64)@(64,128) MXU pass ----
    qkv = jnp.dot(xn, wqkv_ref[...], preferred_element_type=jnp.float32)  # (B*T, 128)

    cos = cos_ref[...]                                    # (T, HD)
    sin = sin_ref[...]                                    # (T, HD)
    half = HD // 2
    scale = 1.0 / math.sqrt(HD)

    # causal mask (diagonal always unmasked -> no all-(-inf) softmax rows)
    row = lax.broadcasted_iota(jnp.int32, (T, T), 0)
    col = lax.broadcasted_iota(jnp.int32, (T, T), 1)
    causal = col <= row

    def rope(v):  # v: (T, HD), llama-style rotate_half convention
        v_rot = jnp.concatenate([-v[:, half:], v[:, :half]], axis=-1)
        return v * cos + v_rot * sin

    k_off = D                   # k columns start
    v_off = D + KVH * HD        # v columns start

    batch_rows = []
    for b in range(B):                     # tiny static loop, unrolled at trace time
        r0 = b * T
        # RoPE'd keys / raw values per KV head (computed once, shared by N_REP q-heads)
        k_rot = []
        v_kv = []
        for g in range(KVH):
            k_bh = qkv[r0:r0 + T, k_off + g * HD:k_off + (g + 1) * HD]
            v_bh = qkv[r0:r0 + T, v_off + g * HD:v_off + (g + 1) * HD]
            k_rot.append(rope(k_bh))
            v_kv.append(v_bh)

        head_cols = []
        for h in range(H):
            g = h // N_REP                 # implicit repeat_kv (GQA)
            q_bh = qkv[r0:r0 + T, h * HD:(h + 1) * HD]
            q_rot = rope(q_bh)

            s = jnp.dot(q_rot, k_rot[g].T, preferred_element_type=jnp.float32) * scale
            s = jnp.where(causal, s, -jnp.inf)
            m = jnp.max(s, axis=-1, keepdims=True)
            p = jnp.exp(s - m)
            p = p * pl.reciprocal(jnp.sum(p, axis=-1, keepdims=True), approx=False)
            head_cols.append(jnp.dot(p, v_kv[g], preferred_element_type=jnp.float32))

        batch_rows.append(jnp.concatenate(head_cols, axis=-1))      # (T, D)
    attn = jnp.concatenate(batch_rows, axis=0)                      # (B*T, D)

    # ---- output projection + residual (fused) ----
    x1 = x + jnp.dot(attn, wo_ref[...], preferred_element_type=jnp.float32)

    # ---- RMSNorm (ffn branch) ----
    ms2 = jnp.mean(x1 * x1, axis=-1, keepdims=True)
    xn2 = g_ffn_ref[...] * (x1 * lax.rsqrt(ms2 + RMS_EPS))

    # ---- fused FFN: one (32,64)@(64,256) pass for w1|w3, relu gate, w2 + residual ----
    h13 = jnp.dot(xn2, w13_ref[...], preferred_element_type=jnp.float32)  # (B*T, 256)
    hidden = jnp.maximum(h13[:, :FFN_HID], 0.0) * h13[:, FFN_HID:]        # relu gate
    o_ref[...] = x1 + jnp.dot(hidden, w2_ref[...], preferred_element_type=jnp.float32)


# ----------------------------- Block forward -----------------------------
def block_forward(x, cos, sin, params):
    """x: (B, T, D) float32. Returns (y, aux_loss=None) matching the module."""
    xf = x.reshape(B * T, D)
    out = pl.pallas_call(
        _block_kernel,
        out_shape=jax.ShapeDtypeStruct((B * T, D), jnp.float32),
        # No grid / BlockSpecs: every operand (< ~120 KB total) is brought
        # fully into VMEM; single kernel invocation, single HBM writeback.
    )(xf, params["wqkv"], params["wo"], params["w13"], params["w2"],
      params["g_attn"], params["g_ffn"], cos, sin)
    return out.reshape(B, T, D), None                     # aux_loss is None


# ----------------------------- pure-JAX reference -----------------------------
def _ref_block(x, cos, sin, p):
    def rms(v, g):
        ms = jnp.mean(v * v, axis=-1, keepdims=True)
        return g * (v * lax.rsqrt(ms + RMS_EPS))

    def rot_half(v):
        h = v.shape[-1] // 2
        return jnp.concatenate([-v[..., h:], v[..., :h]], axis=-1)

    xn = rms(x, p["g_attn"][0])
    q = (xn @ p["wq"]).reshape(B, T, H, HD).transpose(0, 2, 1, 3)
    k = (xn @ p["wk"]).reshape(B, T, KVH, HD).transpose(0, 2, 1, 3)
    v = (xn @ p["wv"]).reshape(B, T, KVH, HD).transpose(0, 2, 1, 3)
    q = q * cos + rot_half(q) * sin
    k = k * cos + rot_half(k) * sin
    k = jnp.repeat(k, N_REP, axis=1)
    v = jnp.repeat(v, N_REP, axis=1)
    s = jnp.einsum("bhqd,bhkd->bhqk", q, k) / math.sqrt(HD)
    mask = jnp.triu(jnp.ones((T, T), bool), k=1)
    s = jnp.where(mask, -jnp.inf, s)
    w = jax.nn.softmax(s, axis=-1)
    o = jnp.einsum("bhqk,bhkd->bhqd", w, v).transpose(0, 2, 1, 3).reshape(B, T, D)
    x = x + o @ p["wo"]
    xn2 = rms(x, p["g_ffn"][0])
    h = jnp.maximum(xn2 @ p["w1"], 0.0) * (xn2 @ p["w3"])
    return x + h @ p["w2"]


# ----------------------------- main -----------------------------
if __name__ == "__main__":
    key = jax.random.PRNGKey(0)
    keys = jax.random.split(key, 8)

    std = 1.0 / math.sqrt(D)
    params = {
        "wq": jax.random.normal(keys[0], (D, D), jnp.float32) * std,
        "wk": jax.random.normal(keys[1], (D, KVH * HD), jnp.float32) * std,
        "wv": jax.random.normal(keys[2], (D, KVH * HD), jnp.float32) * std,
        "wo": jax.random.normal(keys[3], (D, D), jnp.float32) * std,
        "w1": jax.random.normal(keys[4], (D, FFN_HID), jnp.float32) * std,
        "w2": jax.random.normal(keys[5], (FFN_HID, D), jnp.float32) * (1.0 / math.sqrt(FFN_HID)),
        "w3": jax.random.normal(keys[6], (D, FFN_HID), jnp.float32) * std,
        "g_attn": jnp.ones((1, D), jnp.float32),
        "g_ffn": jnp.ones((1, D), jnp.float32),
    }
    # Fused weights for the kernel (built once, outside the hot path):
    params["wqkv"] = jnp.concatenate([params["wq"], params["wk"], params["wv"]], axis=1)  # (64, 128)
    params["w13"] = jnp.concatenate([params["w1"], params["w3"]], axis=1)                 # (64, 256)

    # RoPE tables (llama-style, matches the module's rotate_half convention)
    inv_freq = 1.0 / (ROPE_THETA ** (jnp.arange(0, HD, 2, dtype=jnp.float32) / HD))
    angles = jnp.outer(jnp.arange(T, dtype=jnp.float32), inv_freq)        # (T, HD/2)
    cos = jnp.concatenate([jnp.cos(angles), jnp.cos(angles)], axis=-1)    # (T, HD)
    sin = jnp.concatenate([jnp.sin(angles), jnp.sin(angles)], axis=-1)    # (T, HD)

    x = jax.random.normal(keys[7], (B, T, D), jnp.float32)

    y, aux_loss = block_forward(x, cos, sin, params)
    y = jax.block_until_ready(y)

    y_ref = _ref_block(x, cos, sin, params)
    assert aux_loss is None
    assert jnp.allclose(y, y_ref, atol=1e-4, rtol=1e-4), (
        float(jnp.max(jnp.abs(y - y_ref))))

    print("KERNEL_OK")
</pallas_src>

<mosaic_0001>
module attributes {stable_mosaic.version = 11 : i64} {
  func.func @_block_kernel(%arg0: memref<32x64xf32, #tpu.memory_space<vmem>>, %arg1: memref<64x128xf32, #tpu.memory_space<vmem>>, %arg2: memref<64x64xf32, #tpu.memory_space<vmem>>, %arg3: memref<64x256xf32, #tpu.memory_space<vmem>>, %arg4: memref<128x64xf32, #tpu.memory_space<vmem>>, %arg5: memref<1x64xf32, #tpu.memory_space<vmem>>, %arg6: memref<1x64xf32, #tpu.memory_space<vmem>>, %arg7: memref<16x16xf32, #tpu.memory_space<vmem>>, %arg8: memref<16x16xf32, #tpu.memory_space<vmem>>, %arg9: memref<32x64xf32, #tpu.memory_space<vmem>>) attributes {dimension_semantics = [], scalar_prefetch = 0 : i64, scratch_operands = 0 : i64, tpu.core_type = #tpu.core_type<tc>} {
    %c0 = arith.constant 0 : index
    %c0_0 = arith.constant 0 : index
    %0 = vector.load %arg0[%c0, %c0_0] : memref<32x64xf32, #tpu.memory_space<vmem>>, vector<32x64xf32>
    %1 = arith.mulf %0, %0 : vector<32x64xf32>
    %cst = arith.constant dense<0.000000e+00> : vector<32xf32>
    %2 = vector.multi_reduction <add>, %1, %cst [1] : vector<32x64xf32> to vector<32xf32>
    %3 = vector.shape_cast %2 : vector<32xf32> to vector<32x1xf32>
    %cst_1 = arith.constant 6.400000e+01 : f32
    %4 = vector.broadcast %cst_1 : f32 to vector<32x1xf32>
    %5 = arith.divf %3, %4 : vector<32x1xf32>
    %c0_2 = arith.constant 0 : index
    %c0_3 = arith.constant 0 : index
    %6 = vector.load %arg5[%c0_2, %c0_3] : memref<1x64xf32, #tpu.memory_space<vmem>>, vector<1x64xf32>
    %cst_4 = arith.constant 9.99999997E-7 : f32
    %7 = vector.broadcast %cst_4 : f32 to vector<32x1xf32>
    %8 = arith.addf %5, %7 : vector<32x1xf32>
    %9 = math.rsqrt %8 : vector<32x1xf32>
    %10 = vector.broadcast %9 : vector<32x1xf32> to vector<32x64xf32>
    %11 = arith.mulf %0, %10 : vector<32x64xf32>
    %12 = vector.broadcast %6 : vector<1x64xf32> to vector<32x64xf32>
    %13 = arith.mulf %12, %11 : vector<32x64xf32>
    %c0_5 = arith.constant 0 : index
    %c0_6 = arith.constant 0 : index
    %14 = vector.load %arg1[%c0_5, %c0_6] : memref<64x128xf32, #tpu.memory_space<vmem>>, vector<64x128xf32>
    %cst_7 = arith.constant dense<0.000000e+00> : vector<32x128xf32>
    %15 = tpu.matmul %13, %14, %cst_7 {dimension_numbers = #tpu.dot_dimension_numbers<[1], [0], [0], [1], [0, 0, 1, 1], [], []>} : vector<32x64xf32>, vector<64x128xf32>, vector<32x128xf32> -> vector<32x128xf32>
    %c0_8 = arith.constant 0 : index
    %c0_9 = arith.constant 0 : index
    %16 = vector.load %arg7[%c0_8, %c0_9] : memref<16x16xf32, #tpu.memory_space<vmem>>, vector<16x16xf32>
    %c0_10 = arith.constant 0 : index
    %c0_11 = arith.constant 0 : index
    %17 = vector.load %arg8[%c0_10, %c0_11] : memref<16x16xf32, #tpu.memory_space<vmem>>, vector<16x16xf32>
    %18 = tpu.iota {dimensions = array<i32: 0>} : vector<16x16xi32>
    %19 = tpu.iota {dimensions = array<i32: 1>} : vector<16x16xi32>
    %20 = arith.cmpi sle, %19, %18 : vector<16x16xi32>
    %21 = vector.extract_strided_slice %15 {offsets = [0, 64], sizes = [16, 16], strides = [1, 1]} : vector<32x128xf32> to vector<16x16xf32>
    %22 = vector.extract_strided_slice %15 {offsets = [0, 96], sizes = [16, 16], strides = [1, 1]} : vector<32x128xf32> to vector<16x16xf32>
    %23 = vector.extract_strided_slice %21 {offsets = [0, 8], sizes = [16, 8], strides = [1, 1]} : vector<16x16xf32> to vector<16x8xf32>
    %cst_12 = arith.constant 0.000000e+00 : f32
    %24 = vector.broadcast %cst_12 : f32 to vector<16x8xf32>
    %25 = arith.subf %24, %23 : vector<16x8xf32>
    %26 = vector.extract_strided_slice %21 {offsets = [0, 0], sizes = [16, 8], strides = [1, 1]} : vector<16x16xf32> to vector<16x8xf32>
    %27 = tpu.concatenate %25, %26 in 1 : vector<16x8xf32>, vector<16x8xf32> -> vector<16x16xf32>
    %28 = arith.mulf %21, %16 : vector<16x16xf32>
    %29 = arith.mulf %27, %17 : vector<16x16xf32>
    %30 = arith.addf %28, %29 : vector<16x16xf32>
    %31 = vector.extract_strided_slice %15 {offsets = [0, 80], sizes = [16, 16], strides = [1, 1]} : vector<32x128xf32> to vector<16x16xf32>
    %32 = vector.extract_strided_slice %15 {offsets = [0, 112], sizes = [16, 16], strides = [1, 1]} : vector<32x128xf32> to vector<16x16xf32>
    %33 = vector.extract_strided_slice %31 {offsets = [0, 8], sizes = [16, 8], strides = [1, 1]} : vector<16x16xf32> to vector<16x8xf32>
    %cst_13 = arith.constant 0.000000e+00 : f32
    %34 = vector.broadcast %cst_13 : f32 to vector<16x8xf32>
    %35 = arith.subf %34, %33 : vector<16x8xf32>
    %36 = vector.extract_strided_slice %31 {offsets = [0, 0], sizes = [16, 8], strides = [1, 1]} : vector<16x16xf32> to vector<16x8xf32>
    %37 = tpu.concatenate %35, %36 in 1 : vector<16x8xf32>, vector<16x8xf32> -> vector<16x16xf32>
    %38 = arith.mulf %31, %16 : vector<16x16xf32>
    %39 = arith.mulf %37, %17 : vector<16x16xf32>
    %40 = arith.addf %38, %39 : vector<16x16xf32>
    %41 = vector.extract_strided_slice %15 {offsets = [0, 0], sizes = [16, 16], strides = [1, 1]} : vector<32x128xf32> to vector<16x16xf32>
    %42 = vector.extract_strided_slice %41 {offsets = [0, 8], sizes = [16, 8], strides = [1, 1]} : vector<16x16xf32> to vector<16x8xf32>
    %cst_14 = arith.constant 0.000000e+00 : f32
    %43 = vector.broadcast %cst_14 : f32 to vector<16x8xf32>
    %44 = arith.subf %43, %42 : vector<16x8xf32>
    %45 = vector.extract_strided_slice %41 {offsets = [0, 0], sizes = [16, 8], strides = [1, 1]} : vector<16x16xf32> to vector<16x8xf32>
    %46 = tpu.concatenate %44, %45 in 1 : vector<16x8xf32>, vector<16x8xf32> -> vector<16x16xf32>
    %47 = arith.mulf %41, %16 : vector<16x16xf32>
    %48 = arith.mulf %46, %17 : vector<16x16xf32>
    %49 = arith.addf %47, %48 : vector<16x16xf32>
    %50 = tpu.transpose %30, [1, 0] : vector<16x16xf32> -> vector<16x16xf32>
    %cst_15 = arith.constant dense<0.000000e+00> : vector<16x16xf32>
    %51 = tpu.matmul %49, %50, %cst_15 {dimension_numbers = #tpu.dot_dimension_numbers<[1], [0], [0], [1], [0, 0, 1, 1], [], []>} : vector<16x16xf32>, vector<16x16xf32>, vector<16x16xf32> -> vector<16x16xf32>
    %cst_16 = arith.constant 2.500000e-01 : f32
    %52 = vector.broadcast %cst_16 : f32 to vector<16x16xf32>
    %53 = arith.mulf %51, %52 : vector<16x16xf32>
    %cst_17 = arith.constant 0xFF800000 : f32
    %54 = vector.broadcast %cst_17 : f32 to vector<16x16xf32>
    %55 = arith.select %20, %53, %54 : vector<16x16xi1>, vector<16x16xf32>
    %cst_18 = arith.constant dense<0xFF800000> : vector<16xf32>
    %56 = vector.multi_reduction <maximumf>, %55, %cst_18 [1] : vector<16x16xf32> to vector<16xf32>
    %57 = vector.shape_cast %56 : vector<16xf32> to vector<16x1xf32>
    %58 = vector.broadcast %57 : vector<16x1xf32> to vector<16x16xf32>
    %59 = arith.subf %55, %58 : vector<16x16xf32>
    %60 = math.exp %59 : vector<16x16xf32>
    %cst_19 = arith.constant dense<0.000000e+00> : vector<16xf32>
    %61 = vector.multi_reduction <add>, %60, %cst_19 [1] : vector<16x16xf32> to vector<16xf32>
    %62 = vector.shape_cast %61 : vector<16xf32> to vector<16x1xf32>
    %63 = tpu.reciprocal %62 : vector<16x1xf32> -> vector<16x1xf32>
    %64 = vector.broadcast %63 : vector<16x1xf32> to vector<16x16xf32>
    %65 = arith.mulf %60, %64 : vector<16x16xf32>
    %cst_20 = arith.constant dense<0.000000e+00> : vector<16x16xf32>
    %66 = tpu.matmul %65, %22, %cst_20 {dimension_numbers = #tpu.dot_dimension_numbers<[1], [0], [0], [1], [0, 0, 1, 1], [], []>} : vector<16x16xf32>, vector<16x16xf32>, vector<16x16xf32> -> vector<16x16xf32>
    %67 = vector.extract_strided_slice %15 {offsets = [0, 16], sizes = [16, 16], strides = [1, 1]} : vector<32x128xf32> to vector<16x16xf32>
    %68 = vector.extract_strided_slice %67 {offsets = [0, 8], sizes = [16, 8], strides = [1, 1]} : vector<16x16xf32> to vector<16x8xf32>
    %cst_21 = arith.constant 0.000000e+00 : f32
    %69 = vector.broadcast %cst_21 : f32 to vector<16x8xf32>
    %70 = arith.subf %69, %68 : vector<16x8xf32>
    %71 = vector.extract_strided_slice %67 {offsets = [0, 0], sizes = [16, 8], strides = [1, 1]} : vector<16x16xf32> to vector<16x8xf32>
    %72 = tpu.concatenate %70, %71 in 1 : vector<16x8xf32>, vector<16x8xf32> -> vector<16x16xf32>
    %73 = arith.mulf %67, %16 : vector<16x16xf32>
    %74 = arith.mulf %72, %17 : vector<16x16xf32>
    %75 = arith.addf %73, %74 : vector<16x16xf32>
    %76 = tpu.transpose %30, [1, 0] : vector<16x16xf32> -> vector<16x16xf32>
    %cst_22 = arith.constant dense<0.000000e+00> : vector<16x16xf32>
    %77 = tpu.matmul %75, %76, %cst_22 {dimension_numbers = #tpu.dot_dimension_numbers<[1], [0], [0], [1], [0, 0, 1, 1], [], []>} : vector<16x16xf32>, vector<16x16xf32>, vector<16x16xf32> -> vector<16x16xf32>
    %cst_23 = arith.constant 2.500000e-01 : f32
    %78 = vector.broadcast %cst_23 : f32 to vector<16x16xf32>
    %79 = arith.mulf %77, %78 : vector<16x16xf32>
    %cst_24 = arith.constant 0xFF800000 : f32
    %80 = vector.broadcast %cst_24 : f32 to vector<16x16xf32>
    %81 = arith.select %20, %79, %80 : vector<16x16xi1>, vector<16x16xf32>
    %cst_25 = arith.constant dense<0xFF800000> : vector<16xf32>
    %82 = vector.multi_reduction <maximumf>, %81, %cst_25 [1] : vector<16x16xf32> to vector<16xf32>
    %83 = vector.shape_cast %82 : vector<16xf32> to vector<16x1xf32>
    %84 = vector.broadcast %83 : vector<16x1xf32> to vector<16x16xf32>
    %85 = arith.subf %81, %84 : vector<16x16xf32>
    %86 = math.exp %85 : vector<16x16xf32>
    %cst_26 = arith.constant dense<0.000000e+00> : vector<16xf32>
    %87 = vector.multi_reduction <add>, %86, %cst_26 [1] : vector<16x16xf32> to vector<16xf32>
    %88 = vector.shape_cast %87 : vector<16xf32> to vector<16x1xf32>
    %89 = tpu.reciprocal %88 : vector<16x1xf32> -> vector<16x1xf32>
    %90 = vector.broadcast %89 : vector<16x1xf32> to vector<16x16xf32>
    %91 = arith.mulf %86, %90 : vector<16x16xf32>
    %cst_27 = arith.constant dense<0.000000e+00> : vector<16x16xf32>
    %92 = tpu.matmul %91, %22, %cst_27 {dimension_numbers = #tpu.dot_dimension_numbers<[1], [0], [0], [1], [0, 0, 1, 1], [], []>} : vector<16x16xf32>, vector<16x16xf32>, vector<16x16xf32> -> vector<16x16xf32>
    %93 = vector.extract_strided_slice %15 {offsets = [0, 32], sizes = [16, 16], strides = [1, 1]} : vector<32x128xf32> to vector<16x16xf32>
    %94 = vector.extract_strided_slice %93 {offsets = [0, 8], sizes = [16, 8], strides = [1, 1]} : vector<16x16xf32> to vector<16x8xf32>
    %cst_28 = arith.constant 0.000000e+00 : f32
    %95 = vector.broadcast %cst_28 : f32 to vector<16x8xf32>
    %96 = arith.subf %95, %94 : vector<16x8xf32>
    %97 = vector.extract_strided_slice %93 {offsets = [0, 0], sizes = [16, 8], strides = [1, 1]} : vector<16x16xf32> to vector<16x8xf32>
    %98 = tpu.concatenate %96, %97 in 1 : vector<16x8xf32>, vector<16x8xf32> -> vector<16x16xf32>
    %99 = arith.mulf %93, %16 : vector<16x16xf32>
    %100 = arith.mulf %98, %17 : vector<16x16xf32>
    %101 = arith.addf %99, %100 : vector<16x16xf32>
    %102 = tpu.transpose %40, [1, 0] : vector<16x16xf32> -> vector<16x16xf32>
    %cst_29 = arith.constant dense<0.000000e+00> : vector<16x16xf32>
    %103 = tpu.matmul %101, %102, %cst_29 {dimension_numbers = #tpu.dot_dimension_numbers<[1], [0], [0], [1], [0, 0, 1, 1], [], []>} : vector<16x16xf32>, vector<16x16xf32>, vector<16x16xf32> -> vector<16x16xf32>
    %cst_30 = arith.constant 2.500000e-01 : f32
    %104 = vector.broadcast %cst_30 : f32 to vector<16x16xf32>
    %105 = arith.mulf %103, %104 : vector<16x16xf32>
    %cst_31 = arith.constant 0xFF800000 : f32
    %106 = vector.broadcast %cst_31 : f32 to vector<16x16xf32>
    %107 = arith.select %20, %105, %106 : vector<16x16xi1>, vector<16x16xf32>
    %cst_32 = arith.constant dense<0xFF800000> : vector<16xf32>
    %108 = vector.multi_reduction <maximumf>, %107, %cst_32 [1] : vector<16x16xf32> to vector<16xf32>
    %109 = vector.shape_cast %108 : vector<16xf32> to vector<16x1xf32>
    %110 = vector.broadcast %109 : vector<16x1xf32> to vector<16x16xf32>
    %111 = arith.subf %107, %110 : vector<16x16xf32>
    %112 = math.exp %111 : vector<16x16xf32>
    %cst_33 = arith.constant dense<0.000000e+00> : vector<16xf32>
    %113 = vector.multi_reduction <add>, %112, %cst_33 [1] : vector<16x16xf32> to vector<16xf32>
    %114 = vector.shape_cast %113 : vector<16xf32> to vector<16x1xf32>
    %115 = tpu.reciprocal %114 : vector<16x1xf32> -> vector<16x1xf32>
    %116 = vector.broadcast %115 : vector<16x1xf32> to vector<16x16xf32>
    %117 = arith.mulf %112, %116 : vector<16x16xf32>
    %cst_34 = arith.constant dense<0.000000e+00> : vector<16x16xf32>
    %118 = tpu.matmul %117, %32, %cst_34 {dimension_numbers = #tpu.dot_dimension_numbers<[1], [0], [0], [1], [0, 0, 1, 1], [], []>} : vector<16x16xf32>, vector<16x16xf32>, vector<16x16xf32> -> vector<16x16xf32>
    %119 = vector.extract_strided_slice %15 {offsets = [0, 48], sizes = [16, 16], strides = [1, 1]} : vector<32x128xf32> to vector<16x16xf32>
    %120 = vector.extract_strided_slice %119 {offsets = [0, 8], sizes = [16, 8], strides = [1, 1]} : vector<16x16xf32> to vector<16x8xf32>
    %cst_35 = arith.constant 0.000000e+00 : f32
    %121 = vector.broadcast %cst_35 : f32 to vector<16x8xf32>
    %122 = arith.subf %121, %120 : vector<16x8xf32>
    %123 = vector.extract_strided_slice %119 {offsets = [0, 0], sizes = [16, 8], strides = [1, 1]} : vector<16x16xf32> to vector<16x8xf32>
    %124 = tpu.concatenate %122, %123 in 1 : vector<16x8xf32>, vector<16x8xf32> -> vector<16x16xf32>
    %125 = arith.mulf %119, %16 : vector<16x16xf32>
    %126 = arith.mulf %124, %17 : vector<16x16xf32>
    %127 = arith.addf %125, %126 : vector<16x16xf32>
    %128 = tpu.transpose %40, [1, 0] : vector<16x16xf32> -> vector<16x16xf32>
    %cst_36 = arith.constant dense<0.000000e+00> : vector<16x16xf32>
    %129 = tpu.matmul %127, %128, %cst_36 {dimension_numbers = #tpu.dot_dimension_numbers<[1], [0], [0], [1], [0, 0, 1, 1], [], []>} : vector<16x16xf32>, vector<16x16xf32>, vector<16x16xf32> -> vector<16x16xf32>
    %cst_37 = arith.constant 2.500000e-01 : f32
    %130 = vector.broadcast %cst_37 : f32 to vector<16x16xf32>
    %131 = arith.mulf %129, %130 : vector<16x16xf32>
    %cst_38 = arith.constant 0xFF800000 : f32
    %132 = vector.broadcast %cst_38 : f32 to vector<16x16xf32>
    %133 = arith.select %20, %131, %132 : vector<16x16xi1>, vector<16x16xf32>
    %cst_39 = arith.constant dense<0xFF800000> : vector<16xf32>
    %134 = vector.multi_reduction <maximumf>, %133, %cst_39 [1] : vector<16x16xf32> to vector<16xf32>
    %135 = vector.shape_cast %134 : vector<16xf32> to vector<16x1xf32>
    %136 = vector.broadcast %135 : vector<16x1xf32> to vector<16x16xf32>
    %137 = arith.subf %133, %136 : vector<16x16xf32>
    %138 = math.exp %137 : vector<16x16xf32>
    %cst_40 = arith.constant dense<0.000000e+00> : vector<16xf32>
    %139 = vector.multi_reduction <add>, %138, %cst_40 [1] : vector<16x16xf32> to vector<16xf32>
    %140 = vector.shape_cast %139 : vector<16xf32> to vector<16x1xf32>
    %141 = tpu.reciprocal %140 : vector<16x1xf32> -> vector<16x1xf32>
    %142 = vector.broadcast %141 : vector<16x1xf32> to vector<16x16xf32>
    %143 = arith.mulf %138, %142 : vector<16x16xf32>
    %cst_41 = arith.constant dense<0.000000e+00> : vector<16x16xf32>
    %144 = tpu.matmul %143, %32, %cst_41 {dimension_numbers = #tpu.dot_dimension_numbers<[1], [0], [0], [1], [0, 0, 1, 1], [], []>} : vector<16x16xf32>, vector<16x16xf32>, vector<16x16xf32> -> vector<16x16xf32>
    %145 = tpu.concatenate %66, %92, %118, %144 in 1 : vector<16x16xf32>, vector<16x16xf32>, vector<16x16xf32>, vector<16x16xf32> -> vector<16x64xf32>
    %146 = vector.extract_strided_slice %15 {offsets = [16, 64], sizes = [16, 16], strides = [1, 1]} : vector<32x128xf32> to vector<16x16xf32>
    %147 = vector.extract_strided_slice %15 {offsets = [16, 96], sizes = [16, 16], strides = [1, 1]} : vector<32x128xf32> to vector<16x16xf32>
    %148 = vector.extract_strided_slice %146 {offsets = [0, 8], sizes = [16, 8], strides = [1, 1]} : vector<16x16xf32> to vector<16x8xf32>
    %cst_42 = arith.constant 0.000000e+00 : f32
    %149 = vector.broadcast %cst_42 : f32 to vector<16x8xf32>
    %150 = arith.subf %149, %148 : vector<16x8xf32>
    %151 = vector.extract_strided_slice %146 {offsets = [0, 0], sizes = [16, 8], strides = [1, 1]} : vector<16x16xf32> to vector<16x8xf32>
    %152 = tpu.concatenate %150, %151 in 1 : vector<16x8xf32>, vector<16x8xf32> -> vector<16x16xf32>
    %153 = arith.mulf %146, %16 : vector<16x16xf32>
    %154 = arith.mulf %152, %17 : vector<16x16xf32>
    %155 = arith.addf %153, %154 : vector<16x16xf32>
    %156 = vector.extract_strided_slice %15 {offsets = [16, 80], sizes = [16, 16], strides = [1, 1]} : vector<32x128xf32> to vector<16x16xf32>
    %157 = vector.extract_strided_slice %15 {offsets = [16, 112], sizes = [16, 16], strides = [1, 1]} : vector<32x128xf32> to vector<16x16xf32>
    %158 = vector.extract_strided_slice %156 {offsets = [0, 8], sizes = [16, 8], strides = [1, 1]} : vector<16x16xf32> to vector<16x8xf32>
    %cst_43 = arith.constant 0.000000e+00 : f32
    %159 = vector.broadcast %cst_43 : f32 to vector<16x8xf32>
    %160 = arith.subf %159, %158 : vector<16x8xf32>
    %161 = vector.extract_strided_slice %156 {offsets = [0, 0], sizes = [16, 8], strides = [1, 1]} : vector<16x16xf32> to vector<16x8xf32>
    %162 = tpu.concatenate %160, %161 in 1 : vector<16x8xf32>, vector<16x8xf32> -> vector<16x16xf32>
    %163 = arith.mulf %156, %16 : vector<16x16xf32>
    %164 = arith.mulf %162, %17 : vector<16x16xf32>
    %165 = arith.addf %163, %164 : vector<16x16xf32>
    %166 = vector.extract_strided_slice %15 {offsets = [16, 0], sizes = [16, 16], strides = [1, 1]} : vector<32x128xf32> to vector<16x16xf32>
    %167 = vector.extract_strided_slice %166 {offsets = [0, 8], sizes = [16, 8], strides = [1, 1]} : vector<16x16xf32> to vector<16x8xf32>
    %cst_44 = arith.constant 0.000000e+00 : f32
    %168 = vector.broadcast %cst_44 : f32 to vector<16x8xf32>
    %169 = arith.subf %168, %167 : vector<16x8xf32>
    %170 = vector.extract_strided_slice %166 {offsets = [0, 0], sizes = [16, 8], strides = [1, 1]} : vector<16x16xf32> to vector<16x8xf32>
    %171 = tpu.concatenate %169, %170 in 1 : vector<16x8xf32>, vector<16x8xf32> -> vector<16x16xf32>
    %172 = arith.mulf %166, %16 : vector<16x16xf32>
    %173 = arith.mulf %171, %17 : vector<16x16xf32>
    %174 = arith.addf %172, %173 : vector<16x16xf32>
    %175 = tpu.transpose %155, [1, 0] : vector<16x16xf32> -> vector<16x16xf32>
    %cst_45 = arith.constant dense<0.000000e+00> : vector<16x16xf32>
    %176 = tpu.matmul %174, %175, %cst_45 {dimension_numbers = #tpu.dot_dimension_numbers<[1], [0], [0], [1], [0, 0, 1, 1], [], []>} : vector<16x16xf32>, vector<16x16xf32>, vector<16x16xf32> -> vector<16x16xf32>
    %cst_46 = arith.constant 2.500000e-01 : f32
    %177 = vector.broadcast %cst_46 : f32 to vector<16x16xf32>
    %178 = arith.mulf %176, %177 : vector<16x16xf32>
    %cst_47 = arith.constant 0xFF800000 : f32
    %179 = vector.broadcast %cst_47 : f32 to vector<16x16xf32>
    %180 = arith.select %20, %178, %179 : vector<16x16xi1>, vector<16x16xf32>
    %cst_48 = arith.constant dense<0xFF800000> : vector<16xf32>
    %181 = vector.multi_reduction <maximumf>, %180, %cst_48 [1] : vector<16x16xf32> to vector<16xf32>
    %182 = vector.shape_cast %181 : vector<16xf32> to vector<16x1xf32>
    %183 = vector.broadcast %182 : vector<16x1xf32> to vector<16x16xf32>
    %184 = arith.subf %180, %183 : vector<16x16xf32>
    %185 = math.exp %184 : vector<16x16xf32>
    %cst_49 = arith.constant dense<0.000000e+00> : vector<16xf32>
    %186 = vector.multi_reduction <add>, %185, %cst_49 [1] : vector<16x16xf32> to vector<16xf32>
    %187 = vector.shape_cast %186 : vector<16xf32> to vector<16x1xf32>
    %188 = tpu.reciprocal %187 : vector<16x1xf32> -> vector<16x1xf32>
    %189 = vector.broadcast %188 : vector<16x1xf32> to vector<16x16xf32>
    %190 = arith.mulf %185, %189 : vector<16x16xf32>
    %cst_50 = arith.constant dense<0.000000e+00> : vector<16x16xf32>
    %191 = tpu.matmul %190, %147, %cst_50 {dimension_numbers = #tpu.dot_dimension_numbers<[1], [0], [0], [1], [0, 0, 1, 1], [], []>} : vector<16x16xf32>, vector<16x16xf32>, vector<16x16xf32> -> vector<16x16xf32>
    %192 = vector.extract_strided_slice %15 {offsets = [16, 16], sizes = [16, 16], strides = [1, 1]} : vector<32x128xf32> to vector<16x16xf32>
    %193 = vector.extract_strided_slice %192 {offsets = [0, 8], sizes = [16, 8], strides = [1, 1]} : vector<16x16xf32> to vector<16x8xf32>
    %cst_51 = arith.constant 0.000000e+00 : f32
    %194 = vector.broadcast %cst_51 : f32 to vector<16x8xf32>
    %195 = arith.subf %194, %193 : vector<16x8xf32>
    %196 = vector.extract_strided_slice %192 {offsets = [0, 0], sizes = [16, 8], strides = [1, 1]} : vector<16x16xf32> to vector<16x8xf32>
    %197 = tpu.concatenate %195, %196 in 1 : vector<16x8xf32>, vector<16x8xf32> -> vector<16x16xf32>
    %198 = arith.mulf %192, %16 : vector<16x16xf32>
    %199 = arith.mulf %197, %17 : vector<16x16xf32>
    %200 = arith.addf %198, %199 : vector<16x16xf32>
    %201 = tpu.transpose %155, [1, 0] : vector<16x16xf32> -> vector<16x16xf32>
    %cst_52 = arith.constant dense<0.000000e+00> : vector<16x16xf32>
    %202 = tpu.matmul %200, %201, %cst_52 {dimension_numbers = #tpu.dot_dimension_numbers<[1], [0], [0], [1], [0, 0, 1, 1], [], []>} : vector<16x16xf32>, vector<16x16xf32>, vector<16x16xf32> -> vector<16x16xf32>
    %cst_53 = arith.constant 2.500000e-01 : f32
    %203 = vector.broadcast %cst_53 : f32 to vector<16x16xf32>
    %204 = arith.mulf %202, %203 : vector<16x16xf32>
    %cst_54 = arith.constant 0xFF800000 : f32
    %205 = vector.broadcast %cst_54 : f32 to vector<16x16xf32>
    %206 = arith.select %20, %204, %205 : vector<16x16xi1>, vector<16x16xf32>
    %cst_55 = arith.constant dense<0xFF800000> : vector<16xf32>
    %207 = vector.multi_reduction <maximumf>, %206, %cst_55 [1] : vector<16x16xf32> to vector<16xf32>
    %208 = vector.shape_cast %207 : vector<16xf32> to vector<16x1xf32>
    %209 = vector.broadcast %208 : vector<16x1xf32> to vector<16x16xf32>
    %210 = arith.subf %206, %209 : vector<16x16xf32>
    %211 = math.exp %210 : vector<16x16xf32>
    %cst_56 = arith.constant dense<0.000000e+00> : vector<16xf32>
    %212 = vector.multi_reduction <add>, %211, %cst_56 [1] : vector<16x16xf32> to vector<16xf32>
    %213 = vector.shape_cast %212 : vector<16xf32> to vector<16x1xf32>
    %214 = tpu.reciprocal %213 : vector<16x1xf32> -> vector<16x1xf32>
    %215 = vector.broadcast %214 : vector<16x1xf32> to vector<16x16xf32>
    %216 = arith.mulf %211, %215 : vector<16x16xf32>
    %cst_57 = arith.constant dense<0.000000e+00> : vector<16x16xf32>
    %217 = tpu.matmul %216, %147, %cst_57 {dimension_numbers = #tpu.dot_dimension_numbers<[1], [0], [0], [1], [0, 0, 1, 1], [], []>} : vector<16x16xf32>, vector<16x16xf32>, vector<16x16xf32> -> vector<16x16xf32>
    %218 = vector.extract_strided_slice %15 {offsets = [16, 32], sizes = [16, 16], strides = [1, 1]} : vector<32x128xf32> to vector<16x16xf32>
    %219 = vector.extract_strided_slice %218 {offsets = [0, 8], sizes = [16, 8], strides = [1, 1]} : vector<16x16xf32> to vector<16x8xf32>
    %cst_58 = arith.constant 0.000000e+00 : f32
    %220 = vector.broadcast %cst_58 : f32 to vector<16x8xf32>
    %221 = arith.subf %220, %219 : vector<16x8xf32>
    %222 = vector.extract_strided_slice %218 {offsets = [0, 0], sizes = [16, 8], strides = [1, 1]} : vector<16x16xf32> to vector<16x8xf32>
    %223 = tpu.concatenate %221, %222 in 1 : vector<16x8xf32>, vector<16x8xf32> -> vector<16x16xf32>
    %224 = arith.mulf %218, %16 : vector<16x16xf32>
    %225 = arith.mulf %223, %17 : vector<16x16xf32>
    %226 = arith.addf %224, %225 : vector<16x16xf32>
    %227 = tpu.transpose %165, [1, 0] : vector<16x16xf32> -> vector<16x16xf32>
    %cst_59 = arith.constant dense<0.000000e+00> : vector<16x16xf32>
    %228 = tpu.matmul %226, %227, %cst_59 {dimension_numbers = #tpu.dot_dimension_numbers<[1], [0], [0], [1], [0, 0, 1, 1], [], []>} : vector<16x16xf32>, vector<16x16xf32>, vector<16x16xf32> -> vector<16x16xf32>
    %cst_60 = arith.constant 2.500000e-01 : f32
    %229 = vector.broadcast %cst_60 : f32 to vector<16x16xf32>
    %230 = arith.mulf %228, %229 : vector<16x16xf32>
    %cst_61 = arith.constant 0xFF800000 : f32
    %231 = vector.broadcast %cst_61 : f32 to vector<16x16xf32>
    %232 = arith.select %20, %230, %231 : vector<16x16xi1>, vector<16x16xf32>
    %cst_62 = arith.constant dense<0xFF800000> : vector<16xf32>
    %233 = vector.multi_reduction <maximumf>, %232, %cst_62 [1] : vector<16x16xf32> to vector<16xf32>
    %234 = vector.shape_cast %233 : vector<16xf32> to vector<16x1xf32>
    %235 = vector.broadcast %234 : vector<16x1xf32> to vector<16x16xf32>
    %236 = arith.subf %232, %235 : vector<16x16xf32>
    %237 = math.exp %236 : vector<16x16xf32>
    %cst_63 = arith.constant dense<0.000000e+00> : vector<16xf32>
    %238 = vector.multi_reduction <add>, %237, %cst_63 [1] : vector<16x16xf32> to vector<16xf32>
    %239 = vector.shape_cast %238 : vector<16xf32> to vector<16x1xf32>
    %240 = tpu.reciprocal %239 : vector<16x1xf32> -> vector<16x1xf32>
    %241 = vector.broadcast %240 : vector<16x1xf32> to vector<16x16xf32>
    %242 = arith.mulf %237, %241 : vector<16x16xf32>
    %cst_64 = arith.constant dense<0.000000e+00> : vector<16x16xf32>
    %243 = tpu.matmul %242, %157, %cst_64 {dimension_numbers = #tpu.dot_dimension_numbers<[1], [0], [0], [1], [0, 0, 1, 1], [], []>} : vector<16x16xf32>, vector<16x16xf32>, vector<16x16xf32> -> vector<16x16xf32>
    %244 = vector.extract_strided_slice %15 {offsets = [16, 48], sizes = [16, 16], strides = [1, 1]} : vector<32x128xf32> to vector<16x16xf32>
    %245 = vector.extract_strided_slice %244 {offsets = [0, 8], sizes = [16, 8], strides = [1, 1]} : vector<16x16xf32> to vector<16x8xf32>
    %cst_65 = arith.constant 0.000000e+00 : f32
    %246 = vector.broadcast %cst_65 : f32 to vector<16x8xf32>
    %247 = arith.subf %246, %245 : vector<16x8xf32>
    %248 = vector.extract_strided_slice %244 {offsets = [0, 0], sizes = [16, 8], strides = [1, 1]} : vector<16x16xf32> to vector<16x8xf32>
    %249 = tpu.concatenate %247, %248 in 1 : vector<16x8xf32>, vector<16x8xf32> -> vector<16x16xf32>
    %250 = arith.mulf %244, %16 : vector<16x16xf32>
    %251 = arith.mulf %249, %17 : vector<16x16xf32>
    %252 = arith.addf %250, %251 : vector<16x16xf32>
    %253 = tpu.transpose %165, [1, 0] : vector<16x16xf32> -> vector<16x16xf32>
    %cst_66 = arith.constant dense<0.000000e+00> : vector<16x16xf32>
    %254 = tpu.matmul %252, %253, %cst_66 {dimension_numbers = #tpu.dot_dimension_numbers<[1], [0], [0], [1], [0, 0, 1, 1], [], []>} : vector<16x16xf32>, vector<16x16xf32>, vector<16x16xf32> -> vector<16x16xf32>
    %cst_67 = arith.constant 2.500000e-01 : f32
    %255 = vector.broadcast %cst_67 : f32 to vector<16x16xf32>
    %256 = arith.mulf %254, %255 : vector<16x16xf32>
    %cst_68 = arith.constant 0xFF800000 : f32
    %257 = vector.broadcast %cst_68 : f32 to vector<16x16xf32>
    %258 = arith.select %20, %256, %257 : vector<16x16xi1>, vector<16x16xf32>
    %cst_69 = arith.constant dense<0xFF800000> : vector<16xf32>
    %259 = vector.multi_reduction <maximumf>, %258, %cst_69 [1] : vector<16x16xf32> to vector<16xf32>
    %260 = vector.shape_cast %259 : vector<16xf32> to vector<16x1xf32>
    %261 = vector.broadcast %260 : vector<16x1xf32> to vector<16x16xf32>
    %262 = arith.subf %258, %261 : vector<16x16xf32>
    %263 = math.exp %262 : vector<16x16xf32>
    %cst_70 = arith.constant dense<0.000000e+00> : vector<16xf32>
    %264 = vector.multi_reduction <add>, %263, %cst_70 [1] : vector<16x16xf32> to vector<16xf32>
    %265 = vector.shape_cast %264 : vector<16xf32> to vector<16x1xf32>
    %266 = tpu.reciprocal %265 : vector<16x1xf32> -> vector<16x1xf32>
    %267 = vector.broadcast %266 : vector<16x1xf32> to vector<16x16xf32>
    %268 = arith.mulf %263, %267 : vector<16x16xf32>
    %cst_71 = arith.constant dense<0.000000e+00> : vector<16x16xf32>
    %269 = tpu.matmul %268, %157, %cst_71 {dimension_numbers = #tpu.dot_dimension_numbers<[1], [0], [0], [1], [0, 0, 1, 1], [], []>} : vector<16x16xf32>, vector<16x16xf32>, vector<16x16xf32> -> vector<16x16xf32>
    %270 = tpu.concatenate %191, %217, %243, %269 in 1 : vector<16x16xf32>, vector<16x16xf32>, vector<16x16xf32>, vector<16x16xf32> -> vector<16x64xf32>
    %271 = tpu.concatenate %145, %270 in 0 : vector<16x64xf32>, vector<16x64xf32> -> vector<32x64xf32>
    %c0_72 = arith.constant 0 : index
    %c0_73 = arith.constant 0 : index
    %272 = vector.load %arg2[%c0_72, %c0_73] : memref<64x64xf32, #tpu.memory_space<vmem>>, vector<64x64xf32>
    %cst_74 = arith.constant dense<0.000000e+00> : vector<32x64xf32>
    %273 = tpu.matmul %271, %272, %cst_74 {dimension_numbers = #tpu.dot_dimension_numbers<[1], [0], [0], [1], [0, 0, 1, 1], [], []>} : vector<32x64xf32>, vector<64x64xf32>, vector<32x64xf32> -> vector<32x64xf32>
    %274 = arith.addf %0, %273 : vector<32x64xf32>
    %275 = arith.mulf %274, %274 : vector<32x64xf32>
    %cst_75 = arith.constant dense<0.000000e+00> : vector<32xf32>
    %276 = vector.multi_reduction <add>, %275, %cst_75 [1] : vector<32x64xf32> to vector<32xf32>
    %277 = vector.shape_cast %276 : vector<32xf32> to vector<32x1xf32>
    %cst_76 = arith.constant 6.400000e+01 : f32
    %278 = vector.broadcast %cst_76 : f32 to vector<32x1xf32>
    %279 = arith.divf %277, %278 : vector<32x1xf32>
    %c0_77 = arith.constant 0 : index
    %c0_78 = arith.constant 0 : index
    %280 = vector.load %arg6[%c0_77, %c0_78] : memref<1x64xf32, #tpu.memory_space<vmem>>, vector<1x64xf32>
    %cst_79 = arith.constant 9.99999997E-7 : f32
    %281 = vector.broadcast %cst_79 : f32 to vector<32x1xf32>
    %282 = arith.addf %279, %281 : vector<32x1xf32>
    %283 = math.rsqrt %282 : vector<32x1xf32>
    %284 = vector.broadcast %283 : vector<32x1xf32> to vector<32x64xf32>
    %285 = arith.mulf %274, %284 : vector<32x64xf32>
    %286 = vector.broadcast %280 : vector<1x64xf32> to vector<32x64xf32>
    %287 = arith.mulf %286, %285 : vector<32x64xf32>
    %c0_80 = arith.constant 0 : index
    %c0_81 = arith.constant 0 : index
    %288 = vector.load %arg3[%c0_80, %c0_81] : memref<64x256xf32, #tpu.memory_space<vmem>>, vector<64x256xf32>
    %cst_82 = arith.constant dense<0.000000e+00> : vector<32x256xf32>
    %289 = tpu.matmul %287, %288, %cst_82 {dimension_numbers = #tpu.dot_dimension_numbers<[1], [0], [0], [1], [0, 0, 1, 1], [], []>} : vector<32x64xf32>, vector<64x256xf32>, vector<32x256xf32> -> vector<32x256xf32>
    %290 = vector.extract_strided_slice %289 {offsets = [0, 0], sizes = [32, 128], strides = [1, 1]} : vector<32x256xf32> to vector<32x128xf32>
    %cst_83 = arith.constant 0.000000e+00 : f32
    %291 = vector.broadcast %cst_83 : f32 to vector<32x128xf32>
    %292 = arith.maximumf %290, %291 : vector<32x128xf32>
    %293 = vector.extract_strided_slice %289 {offsets = [0, 128], sizes = [32, 128], strides = [1, 1]} : vector<32x256xf32> to vector<32x128xf32>
    %294 = arith.mulf %292, %293 : vector<32x128xf32>
    %c0_84 = arith.constant 0 : index
    %c0_85 = arith.constant 0 : index
    %295 = vector.load %arg4[%c0_84, %c0_85] : memref<128x64xf32, #tpu.memory_space<vmem>>, vector<128x64xf32>
    %cst_86 = arith.constant dense<0.000000e+00> : vector<32x64xf32>
    %296 = tpu.matmul %294, %295, %cst_86 {dimension_numbers = #tpu.dot_dimension_numbers<[1], [0], [0], [1], [0, 0, 1, 1], [], []>} : vector<32x128xf32>, vector<128x64xf32>, vector<32x64xf32> -> vector<32x64xf32>
    %297 = arith.addf %274, %296 : vector<32x64xf32>
    %c0_87 = arith.constant 0 : index
    %c0_88 = arith.constant 0 : index
    %298 = vector.load %arg9[%c0_87, %c0_88] : memref<32x64xf32, #tpu.memory_space<vmem>>, vector<32x64xf32>
    tpu.vector_store %arg9[%c0_87, %c0_88], %297 {strides = array<i32>} : memref<32x64xf32, #tpu.memory_space<vmem>>, vector<32x64xf32>,
    return
  }
}

</mosaic_0001>

<llo_original>
// kernel: tpu_custom_call.1
$region0: #{tpu_custom_call.1}
  #allocation0 [shape = 'u32[]', space=smem, size = 0x4, offset = 0x4, fixed_abs, tag = 'smem constant byte address 0x4 - core index']
  #allocation1 [shape = 'u32[144,128]{1,0:T(1,128)}', space=vmem, size = 0x12000, scoped, tag = 'internal scratch']
  %s0 = inlined_call_operand.hbm [shape: f32[32,64], index: 0, kind: input, shape index: {}]
  %s1 = inlined_call_operand.vmem [shape: f32[64,128], index: 1, kind: input, shape index: {}]
  %s2 = inlined_call_operand.hbm [shape: f32[64,64], index: 2, kind: input, shape index: {}]
  %s3 = inlined_call_operand.vmem [shape: f32[64,256], index: 3, kind: input, shape index: {}]
  %s4 = inlined_call_operand.vmem [shape: f32[128,64], index: 4, kind: input, shape index: {}]
  %s5 = inlined_call_operand.vmem [shape: f32[1,64], index: 5, kind: input, shape index: {}]
  %s6 = inlined_call_operand.vmem [shape: f32[1,64], index: 6, kind: input, shape index: {}]
  %s7 = inlined_call_operand.vmem [shape: f32[16,16], index: 7, kind: input, shape index: {}]
  %s8 = inlined_call_operand.hbm [shape: f32[16,16], index: 8, kind: input, shape index: {}]
  %s9 = inlined_call_operand.hbm [shape: f32[32,64], index: 9, kind: output, shape index: {}]
  %s10 = sld [smem:[#allocation0]]
  $region58: #{tpu_custom_call.1} parent=0
    _
  %s12 = ssub.s32 1, %s10
  %s13 = scalar_select 0, %s12, %s10
  $region1: #{tpu_custom_call.1} parent=0
    #allocation2 [shape = 'u8[16384]{0}', space=vmem, size = 0x4000, scoped, tag = 'input window, operand 0, single buffered']
    #allocation3 [shape = 's32[1]{0}', space=sflag, size = 0x4, scoped, tag = 'scoped memory for tpu_custom_call.1']
    #allocation4 [shape = 's32[1]{0}', space=sflag, size = 0x4, scoped, tag = 'scoped memory for tpu_custom_call.1']
    #allocation5 [shape = 'u8[32768]{0}', space=vmem, size = 0x8000, scoped, tag = 'input window, operand 2, single buffered']
    #allocation6 [shape = 's32[1]{0}', space=sflag, size = 0x4, scoped, tag = 'scoped memory for tpu_custom_call.1']
    #allocation7 [shape = 'u8[8192]{0}', space=vmem, size = 0x2000, scoped, tag = 'input window, operand 8, single buffered']
    #allocation8 [shape = 'u8[16384]{0}', space=vmem, size = 0x4000, scoped, tag = 'output window, operand 0, single buffered']
    %14 = vsyncpa [#allocation3], 0
    %15 = vsyncpa [#allocation6], 0
    %16 = vsyncpa [#allocation4], 0
    // Predicated region
    $region2: #{tpu_custom_call.1} parent=1 // pred_check
      _
    $region3: #{tpu_custom_call.1} parent=1 // pred_check_branch
      %18 = sbr.rel (0) target = $region5
    $region4: #{tpu_custom_call.1} parent=1 // pred_region
      %s20 = ssub.s32 512, 512
      %21 = vsyncadd [#allocation3], %s20
      %s22 = sshll.u32 [#allocation2], 4
      %s23 = int_to_ptr.vmem [resolvable:$true] %s22
      %28 = dma.hbm_to_vmem [thread:$0]  %s0, 512, %s23, [#allocation3], 128, 128, 8
    $region5: #{tpu_custom_call.1} parent=1 // pred_fallthru
      _
    // Predicated region
    $region6: #{tpu_custom_call.1} parent=1 // pred_check
      _
    $region7: #{tpu_custom_call.1} parent=1 // pred_check_branch
      %30 = sbr.rel (0) target = $region9
    $region8: #{tpu_custom_call.1} parent=1 // pred_region
      _
    $region9: #{tpu_custom_call.1} parent=1 // pred_fallthru
      _
    // Predicated region
    $region10: #{tpu_custom_call.1} parent=1 // pred_check
      _
    $region11: #{tpu_custom_call.1} parent=1 // pred_check_branch
      %32 = sbr.rel (0) target = $region13
    $region12: #{tpu_custom_call.1} parent=1 // pred_region
      %s34 = ssub.s32 1024, 1024
      %35 = vsyncadd [#allocation6], %s34
      %s36 = sshll.u32 [#allocation5], 4
      %s37 = int_to_ptr.vmem [resolvable:$true] %s36
      %42 = dma.hbm_to_vmem [thread:$0]  %s2, 1024, %s37, [#allocation6], 128, 128, 8
    $region13: #{tpu_custom_call.1} parent=1 // pred_fallthru
      _
    // Predicated region
    $region14: #{tpu_custom_call.1} parent=1 // pred_check
      _
    $region15: #{tpu_custom_call.1} parent=1 // pred_check_branch
      %44 = sbr.rel (0) target = $region17
    $region16: #{tpu_custom_call.1} parent=1 // pred_region
      _
    $region17: #{tpu_custom_call.1} parent=1 // pred_fallthru
      _
    // Predicated region
    $region18: #{tpu_custom_call.1} parent=1 // pred_check
      _
    $region19: #{tpu_custom_call.1} parent=1 // pred_check_branch
      %46 = sbr.rel (0) target = $region21
    $region20: #{tpu_custom_call.1} parent=1 // pred_region
      _
    $region21: #{tpu_custom_call.1} parent=1 // pred_fallthru
      _
    // Predicated region
    $region22: #{tpu_custom_call.1} parent=1 // pred_check
      _
    $region23: #{tpu_custom_call.1} parent=1 // pred_check_branch
      %48 = sbr.rel (0) target = $region25
    $region24: #{tpu_custom_call.1} parent=1 // pred_region
      _
    $region25: #{tpu_custom_call.1} parent=1 // pred_fallthru
      _
    // Predicated region
    $region26: #{tpu_custom_call.1} parent=1 // pred_check
      _
    $region27: #{tpu_custom_call.1} parent=1 // pred_check_branch
      %50 = sbr.rel (0) target = $region29
    $region28: #{tpu_custom_call.1} parent=1 // pred_region
      _
    $region29: #{tpu_custom_call.1} parent=1 // pred_fallthru
      _
    // Predicated region
    $region30: #{tpu_custom_call.1} parent=1 // pred_check
      _
    $region31: #{tpu_custom_call.1} parent=1 // pred_check_branch
      %52 = sbr.rel (0) target = $region33
    $region32: #{tpu_custom_call.1} parent=1 // pred_region
      _
    $region33: #{tpu_custom_call.1} parent=1 // pred_fallthru
      _
    // Predicated region
    $region34: #{tpu_custom_call.1} parent=1 // pred_check
      _
    $region35: #{tpu_custom_call.1} parent=1 // pred_check_branch
      %54 = sbr.rel (0) target = $region37
    $region36: #{tpu_custom_call.1} parent=1 // pred_region
      %s56 = ssub.s32 256, 256
      %57 = vsyncadd [#allocation6], %s56
      %s58 = sshll.u32 [#allocation7], 4
      %s59 = int_to_ptr.vmem [resolvable:$true] %s58
      %64 = dma.hbm_to_vmem [thread:$0]  %s8, 256, %s59, [#allocation6], 128, 128, 8
    $region37: #{tpu_custom_call.1} parent=1 // pred_fallthru
      _
    // Predicated region
    $region38: #{tpu_custom_call.1} parent=1 // pred_check
      _
    $region39: #{tpu_custom_call.1} parent=1 // pred_check_branch
      %66 = sbr.rel (0) target = $region41
    $region40: #{tpu_custom_call.1} parent=1 // pred_region
      %67 = dma.done [#allocation3], 512
    $region41: #{tpu_custom_call.1} parent=1 // pred_fallthru
      _
    // Predicated region
    $region42: #{tpu_custom_call.1} parent=1 // pred_check
      _
    $region43: #{tpu_custom_call.1} parent=1 // pred_check_branch
      %69 = sbr.rel (0) target = $region45
    $region44: #{tpu_custom_call.1} parent=1 // pred_region
      %70 = dma.done [#allocation6], 1024
    $region45: #{tpu_custom_call.1} parent=1 // pred_fallthru
      _
    // Predicated region
    $region46: #{tpu_custom_call.1} parent=1 // pred_check
      _
    $region47: #{tpu_custom_call.1} parent=1 // pred_check_branch
      %72 = sbr.rel (0) target = $region49
    $region48: #{tpu_custom_call.1} parent=1 // pred_region
      %73 = dma.done [#allocation6], 256
    $region49: #{tpu_custom_call.1} parent=1 // pred_fallthru
      _
    %v74 = vld [vmem:[#allocation2] sm:$0xff]
    %v75 = vld [vmem:[#allocation2 + $0x8] sm:$0xff]
    %v76 = vld [vmem:[#allocation2 + $0x10] sm:$0xff]
    %v77 = vld [vmem:[#allocation2 + $0x18] sm:$0xff]
    %v78 = vmul.f32 %v74, %v74
    %v79 = vmul.f32 %v75, %v75
    %v80 = vmul.f32 %v76, %v76
    %v81 = vmul.f32 %v77, %v77
    %vm82 = vcmask 523264
    %v83 = vsel %vm82, %v78, 0.0
    %84 = vadd.xlane.f32.xlu0 %v83
    %v85 = vpop.xlane.xlu0 %84
    %v86 = vsel %vm82, %v79, 0.0
    %87 = vadd.xlane.f32.xlu0 %v86
    %v88 = vpop.xlane.xlu0 %87
    %v89 = vsel %vm82, %v80, 0.0
    %90 = vadd.xlane.f32.xlu0 %v89
    %v91 = vpop.xlane.xlu0 %90
    %v92 = vsel %vm82, %v81, 0.0
    %93 = vadd.xlane.f32.xlu0 %v92
    %v94 = vpop.xlane.xlu0 %93
    %v95 = vrcp.pop 64.0
    %v96 = vmul.f32 %v85, %v95
    %v97 = vmul.f32 %v88, %v95
    %v98 = vmul.f32 %v91, %v95
    %v99 = vmul.f32 %v94, %v95
    %v100 = vld [vmem:[%s5] sm:$0x1]
    %v101 = vadd.f32 %v96, 1e-06
    %v102 = vadd.f32 %v97, 1e-06
    %v103 = vadd.f32 %v98, 1e-06
    %v104 = vadd.f32 %v99, 1e-06
    %v105 = vrsqrt.pop %v101
    %v106 = vrsqrt.pop %v102
    %v107 = vrsqrt.pop %v103
    %v108 = vrsqrt.pop %v104
    %v109 = vmul.f32 %v74, %v105
    %v110 = vmul.f32 %v75, %v106
    %v111 = vmul.f32 %v76, %v107
    %v112 = vmul.f32 %v77, %v108
    %v114 = vlaneseq
    %v115 = vshrl.u32 %v114, 7
    %v116 = vsub.s32 0, %v115
    %v117 = vrot.slane %v100, %v116
    %v119 = vmul.f32 %v117, %v109
    %v120 = vmul.f32 %v117, %v110
    %v121 = vmul.f32 %v117, %v111
    %v122 = vmul.f32 %v117, %v112
    %v123 = vld [vmem:[%s1] sm:$0xff]
    %v124 = vld [vmem:[%s1 + $0x8] sm:$0xff]
    %v125 = vld [vmem:[%s1 + $0x10] sm:$0xff]
    %v126 = vld [vmem:[%s1 + $0x18] sm:$0xff]
    %v127 = vld [vmem:[%s1 + $0x20] sm:$0xff]
    %v128 = vld [vmem:[%s1 + $0x28] sm:$0xff]
    %v129 = vld [vmem:[%s1 + $0x30] sm:$0xff]
    %v130 = vld [vmem:[%s1 + $0x38] sm:$0xff]
    %v132 = vsel %vm82, %v119, 0
    %v135 = vsel %vm82, %v120, 0
    %v138 = vsel %vm82, %v121, 0
    %v141 = vsel %vm82, %v122, 0
    %143 = vmatprep.subr.mxu0 0.0
    %144 = vmatpush1.msra.mxu0 %v123
    %145 = vmatprep.subr.mxu0 0.0
    %146 = vmatpush1.msra.mxu0 %v124
    %147 = vmatprep.subr.mxu0 0.0
    %148 = vmatpush1.msra.mxu0 %v125
    %149 = vmatprep.subr.mxu0 0.0
    %150 = vmatpush1.msra.mxu0 %v126
    %151 = vmatprep.subr.mxu0 0.0
    %152 = vmatpush1.msra.mxu0 %v127
    %153 = vmatprep.subr.mxu0 0.0
    %154 = vmatpush1.msra.mxu0 %v128
    %155 = vmatprep.subr.mxu0 0.0
    %156 = vmatpush1.msra.mxu0 %v129
    %157 = vmatprep.subr.mxu0 0.0
    %158 = vmatpush1.msra.mxu0 %v130
    %159 = vmatprep.subr.mxu0 0.0
    %160 = vmatpush1.msra.mxu0 0.0
    %161 = vmatprep.subr.mxu0 0.0
    %162 = vmatpush1.msra.mxu0 0.0
    %163 = vmatprep.subr.mxu0 0.0
    %164 = vmatpush1.msra.mxu0 0.0
    %165 = vmatprep.subr.mxu0 0.0
    %166 = vmatpush1.msra.mxu0 0.0
    %167 = vmatprep.subr.mxu0 0.0
    %168 = vmatpush1.msra.mxu0 0.0
    %169 = vmatprep.subr.mxu0 0.0
    %170 = vmatpush1.msra.mxu0 0.0
    %171 = vmatprep.subr.mxu0 0.0
    %172 = vmatpush1.msra.mxu0 0.0
    %173 = vmatprep.subr.mxu0 0.0
    %174 = vmatpush1.msra.mxu0 0.0
    %175 = vmatprep.subr.mxu0 0.0
    %176 = vmatpush1.msra.mxu0 0.0
    %177 = vmatprep.subr.mxu0 0.0
    %178 = vmatpush1.msra.mxu0 0.0
    %179 = vmatprep.subr.mxu0 0.0
    %180 = vmatpush1.msra.mxu0 0.0
    %181 = vmatprep.subr.mxu0 0.0
    %182 = vmatpush1.msra.mxu0 0.0
    %183 = vmatprep.subr.mxu0 0.0
    %184 = vmatpush1.msra.mxu0 0.0
    %185 = vmatprep.subr.mxu0 0.0
    %186 = vmatpush1.msra.mxu0 0.0
    %187 = vmatprep.subr.mxu0 0.0
    %188 = vmatpush1.msra.mxu0 0.0
    %189 = vmatprep.subr.mxu0 0.0
    %190 = vmatpush1.msra.mxu0 0.0
    %191 = vmatprep.subr.mxu0 0.0
    %192 = vmatpush1.msra.mxu0 0.0
    %193 = vmatprep.subr.mxu0 0.0
    %194 = vmatpush1.msra.mxu0 0.0
    %195 = vmatprep.subr.mxu0 0.0
    %196 = vmatpush1.msra.mxu0 0.0
    %197 = vmatprep.subr.mxu0 0.0
    %198 = vmatpush1.msra.mxu0 0.0
    %199 = vmatprep.subr.mxu0 0.0
    %200 = vmatpush1.msra.mxu0 0.0
    %201 = vmatprep.subr.mxu0 0.0
    %202 = vmatpush1.msra.mxu0 0.0
    %203 = vmatprep.subr.mxu0 0.0
    %204 = vmatpush1.msra.mxu0 0.0
    %205 = vmatprep.subr.mxu0 0.0
    %206 = vmatpush1.msra.mxu0 0.0
    %207 = vmatprep.mubr.f32.mxu0 0.0
    %208 = vmatmul.mubr.f32.gmra.mrb[0].mxu0 %v132
    %v209 = vpop.f32.mrb[0].mxu0
    %v210 = vadd.f32 0.0, %v209
    %v211 = vpop.f32.mrb[0].mxu0
    %212 = vmatprep.mubr.f32.mxu0 0.0
    %213 = vmatmul.mubr.f32.gmra.mrb[0].mxu0 %v135
    %v214 = vpop.f32.mrb[0].mxu0
    %v215 = vadd.f32 0.0, %v214
    %v216 = vpop.f32.mrb[0].mxu0
    %217 = vmatprep.mubr.f32.mxu0 0.0
    %218 = vmatmul.mubr.f32.gmra.mrb[0].mxu0 %v138
    %v219 = vpop.f32.mrb[0].mxu0
    %v220 = vadd.f32 0.0, %v219
    %v221 = vpop.f32.mrb[0].mxu0
    %222 = vmatprep.mubr.f32.mxu0 0.0
    %223 = vmatmul.mubr.f32.gmra.mrb[0].mxu0 %v141
    %v224 = vpop.f32.mrb[0].mxu0
    %v225 = vadd.f32 0.0, %v224
    %v226 = vpop.f32.mrb[0].mxu0
    %227 = vdwg.mxu0
    %v228 = vld [vmem:[%s7] sm:$0xff]
    %v229 = vld [vmem:[%s7 + $0x8] sm:$0xff]
    %v230 = vld [vmem:[#allocation7] sm:$0xff]
    %v231 = vld [vmem:[#allocation7 + $0x8] sm:$0xff]
    %v232 = vlaneseq
    %v233 = vshrl.u32 %v232, 7
    %v234 = vadd.s32 %v233, 8
    %v235 = vlaneseq
    %v236 = vand.u32 %v235, 127
    %vm237 = vcmp.le.s32.totalorder %v236, %v233
    %vm238 = vcmp.le.s32.totalorder %v236, %v234
    %v239 = vsub.f32 0.0, %v210
    %v240 = vsub.f32 0.0, %v215
    %243 = vrot.lane.b32.xlu0 %v239, 56
    %v244 = vpop.permute.xlu0 %243
    %245 = vrot.lane.b32.xlu0 %v240, 56
    %v246 = vpop.permute.xlu0 %245
    %251 = vrot.lane.b32.xlu0 %v210, 72
    %v252 = vpop.permute.xlu0 %251
    %253 = vrot.lane.b32.xlu0 %v215, 72
    %v254 = vpop.permute.xlu0 %253
    %vm257 = vcmask 64512
    %v258 = vsel %vm257, %v244, %v252
    %v259 = vsel %vm257, %v246, %v254
    %262 = vrot.lane.b32.xlu0 %v228, 64
    %v263 = vpop.permute.xlu0 %262
    %264 = vrot.lane.b32.xlu0 %v229, 64
    %v265 = vpop.permute.xlu0 %264
    %v268 = vmul.f32 %v210, %v263
    %v269 = vmul.f32 %v215, %v265
    %v270 = vmul.f32 %v258, %v230
    %v271 = vmul.f32 %v259, %v231
    %274 = vrot.lane.b32.xlu0 %v270, 64
    %v275 = vpop.permute.xlu0 %274
    %276 = vrot.lane.b32.xlu0 %v271, 64
    %v277 = vpop.permute.xlu0 %276
    %v280 = vadd.f32 %v268, %v275
    %v281 = vadd.f32 %v269, %v277
    %282 = vrot.lane.b32.xlu0 %v239, 40
    %v283 = vpop.permute.xlu0 %282
    %284 = vrot.lane.b32.xlu0 %v240, 40
    %v285 = vpop.permute.xlu0 %284
    %288 = vrot.lane.b32.xlu0 %v210, 56
    %v289 = vpop.permute.xlu0 %288
    %290 = vrot.lane.b32.xlu0 %v215, 56
    %v291 = vpop.permute.xlu0 %290
    %v294 = vsel %vm257, %v283, %v289
    %v295 = vsel %vm257, %v285, %v291
    %296 = vrot.lane.b32.xlu0 %v228, 80
    %v297 = vpop.permute.xlu0 %296
    %298 = vrot.lane.b32.xlu0 %v229, 80
    %v299 = vpop.permute.xlu0 %298
    %v302 = vmul.f32 %v210, %v297
    %v303 = vmul.f32 %v215, %v299
    %v304 = vmul.f32 %v294, %v230
    %v305 = vmul.f32 %v295, %v231
    %308 = vrot.lane.b32.xlu0 %v304, 80
    %v309 = vpop.permute.xlu0 %308
    %310 = vrot.lane.b32.xlu0 %v305, 80
    %v311 = vpop.permute.xlu0 %310
    %v314 = vadd.f32 %v302, %v309
    %v315 = vadd.f32 %v303, %v311
    %316 = vrot.lane.b32.xlu0 %v239, 120
    %v317 = vpop.permute.xlu0 %316
    %318 = vrot.lane.b32.xlu0 %v240, 120
    %v319 = vpop.permute.xlu0 %318
    %322 = vrot.lane.b32.xlu0 %v210, 8
    %v323 = vpop.permute.xlu0 %322
    %324 = vrot.lane.b32.xlu0 %v215, 8
    %v325 = vpop.permute.xlu0 %324
    %v328 = vsel %vm257, %v317, %v323
    %v329 = vsel %vm257, %v319, %v325
    %v330 = vmul.f32 %v210, %v228
    %v331 = vmul.f32 %v215, %v229
    %v332 = vmul.f32 %v328, %v230
    %v333 = vmul.f32 %v329, %v231
    %v334 = vadd.f32 %v330, %v332
    %v335 = vadd.f32 %v331, %v333
    %338 = vrot.lane.b32.xlu0 %v280, 64
    %v339 = vpop.permute.xlu0 %338
    %340 = vrot.lane.b32.xlu0 %v281, 64
    %v341 = vpop.permute.xlu0 %340
    %vm342 = vcmask 130048
    %v344 = vsel %vm342, %v334, 0
    %v347 = vsel %vm342, %v335, 0
    %v349 = vsel %vm342, %v339, 0
    %v351 = vsel %vm342, %v341, 0
    %353 = vmatprep.subr.mxu0 0.0
    %354 = vmatpush1.xpose.msra.mxu0 %v349
    %355 = vmatprep.subr.mxu0 0.0
    %356 = vmatpush1.xpose.msra.mxu0 %v351
    %357 = vmatprep.subr.mxu0 0.0
    %358 = vmatpush1.xpose.msra.mxu0 0.0
    %359 = vmatprep.subr.mxu0 0.0
    %360 = vmatpush1.xpose.msra.mxu0 0.0
    %361 = vmatprep.subr.mxu0 0.0
    %362 = vmatpush1.xpose.msra.mxu0 0.0
    %363 = vmatprep.subr.mxu0 0.0
    %364 = vmatpush1.xpose.msra.mxu0 0.0
    %365 = vmatprep.subr.mxu0 0.0
    %366 = vmatpush1.xpose.msra.mxu0 0.0
    %367 = vmatprep.subr.mxu0 0.0
    %368 = vmatpush1.xpose.msra.mxu0 0.0
    %369 = vmatprep.subr.mxu0 0.0
    %370 = vmatpush1.xpose.msra.mxu0 0.0
    %371 = vmatprep.subr.mxu0 0.0
    %372 = vmatpush1.xpose.msra.mxu0 0.0
    %373 = vmatprep.subr.mxu0 0.0
    %374 = vmatpush1.xpose.msra.mxu0 0.0
    %375 = vmatprep.subr.mxu0 0.0
    %376 = vmatpush1.xpose.msra.mxu0 0.0
    %377 = vmatprep.subr.mxu0 0.0
    %378 = vmatpush1.xpose.msra.mxu0 0.0
    %379 = vmatprep.subr.mxu0 0.0
    %380 = vmatpush1.xpose.msra.mxu0 0.0
    %381 = vmatprep.subr.mxu0 0.0
    %382 = vmatpush1.xpose.msra.mxu0 0.0
    %383 = vmatprep.subr.mxu0 0.0
    %384 = vmatpush1.xpose.msra.mxu0 0.0
    %385 = vmatprep.subr.mxu0 0.0
    %386 = vmatpush1.xpose.msra.mxu0 0.0
    %387 = vmatprep.subr.mxu0 0.0
    %388 = vmatpush1.xpose.msra.mxu0 0.0
    %389 = vmatprep.subr.mxu0 0.0
    %390 = vmatpush1.xpose.msra.mxu0 0.0
    %391 = vmatprep.subr.mxu0 0.0
    %392 = vmatpush1.xpose.msra.mxu0 0.0
    %393 = vmatprep.subr.mxu0 0.0
    %394 = vmatpush1.xpose.msra.mxu0 0.0
    %395 = vmatprep.subr.mxu0 0.0
    %396 = vmatpush1.xpose.msra.mxu0 0.0
    %397 = vmatprep.subr.mxu0 0.0
    %398 = vmatpush1.xpose.msra.mxu0 0.0
    %399 = vmatprep.subr.mxu0 0.0
    %400 = vmatpush1.xpose.msra.mxu0 0.0
    %401 = vmatprep.subr.mxu0 0.0
    %402 = vmatpush1.xpose.msra.mxu0 0.0
    %403 = vmatprep.subr.mxu0 0.0
    %404 = vmatpush1.xpose.msra.mxu0 0.0
    %405 = vmatprep.subr.mxu0 0.0
    %406 = vmatpush1.xpose.msra.mxu0 0.0
    %407 = vmatprep.subr.mxu0 0.0
    %408 = vmatpush1.xpose.msra.mxu0 0.0
    %409 = vmatprep.subr.mxu0 0.0
    %410 = vmatpush1.xpose.msra.mxu0 0.0
    %411 = vmatprep.subr.mxu0 0.0
    %412 = vmatpush1.xpose.msra.mxu0 0.0
    %413 = vmatprep.subr.mxu0 0.0
    %414 = vmatpush1.xpose.msra.mxu0 0.0
    %415 = vmatprep.subr.mxu0 0.0
    %416 = vmatpush1.xpose.msra.mxu0 0.0
    %417 = vmatprep.mubr.f32.mxu0 0.0
    %418 = vmatmul.mubr.f32.gmra.mrb[0].mxu0 %v344
    %v419 = vpop.f32.mrb[0].mxu0
    %v420 = vadd.f32 0.0, %v419
    %v421 = vpop.f32.mrb[0].mxu0
    %422 = vmatprep.mubr.f32.mxu0 0.0
    %423 = vmatmul.mubr.f32.gmra.mrb[0].mxu0 %v347
    %v424 = vpop.f32.mrb[0].mxu0
    %v425 = vadd.f32 0.0, %v424
    %v426 = vpop.f32.mrb[0].mxu0
    %427 = vdwg.mxu0
    %v428 = vmul.f32 %v420, 0.25
    %v429 = vmul.f32 %v425, 0.25
    %v430 = vsel %vm237, %v428, -inf
    %v431 = vsel %vm238, %v429, -inf
    %v432 = vsel %vm342, %v430, -inf
    %433 = vmax.xlane.f32.xlu0 %v432
    %v434 = vpop.xlane.xlu0 %433
    %v435 = vsel %vm342, %v431, -inf
    %436 = vmax.xlane.f32.xlu0 %v435
    %v437 = vpop.xlane.xlu0 %436
    %v438 = vsub.f32 %v430, %v434
    %v439 = vsub.f32 %v431, %v437
    %v440 = vmul.f32 %v438, 1.442695
    %v441 = vpow.pop %v440
    %v442 = vmul.f32 %v439, 1.442695
    %v443 = vpow.pop %v442
    %v444 = vsel %vm342, %v441, 0.0
    %445 = vadd.xlane.f32.xlu0 %v444
    %v446 = vpop.xlane.xlu0 %445
    %v447 = vsel %vm342, %v443, 0.0
    %448 = vadd.xlane.f32.xlu0 %v447
    %v449 = vpop.xlane.xlu0 %448
    %v450 = vrcp.pop %v446
    %v451 = vrcp.pop %v449
    %v452 = vmul.f32 %v441, %v450
    %v453 = vmul.f32 %v443, %v451
    %454 = vrot.lane.b32.xlu0 %v210, 32
    %v455 = vpop.permute.xlu0 %454
    %456 = vrot.lane.b32.xlu0 %v215, 32
    %v457 = vpop.permute.xlu0 %456
    %v461 = vsel %vm342, %v452, 0
    %v464 = vsel %vm342, %v453, 0
    %466 = vmatprep.subr.mxu0 0.0
    %467 = vmatpush1.msra.mxu0 %v455
    %468 = vmatprep.subr.mxu0 0.0
    %469 = vmatpush1.msra.mxu0 %v457
    %470 = vmatprep.subr.mxu0 0.0
    %471 = vmatpush1.msra.mxu0 0.0
    %472 = vmatprep.subr.mxu0 0.0
    %473 = vmatpush1.msra.mxu0 0.0
    %474 = vmatprep.subr.mxu0 0.0
    %475 = vmatpush1.msra.mxu0 0.0
    %476 = vmatprep.subr.mxu0 0.0
    %477 = vmatpush1.msra.mxu0 0.0
    %478 = vmatprep.subr.mxu0 0.0
    %479 = vmatpush1.msra.mxu0 0.0
    %480 = vmatprep.subr.mxu0 0.0
    %481 = vmatpush1.msra.mxu0 0.0
    %482 = vmatprep.subr.mxu0 0.0
    %483 = vmatpush1.msra.mxu0 0.0
    %484 = vmatprep.subr.mxu0 0.0
    %485 = vmatpush1.msra.mxu0 0.0
    %486 = vmatprep.subr.mxu0 0.0
    %487 = vmatpush1.msra.mxu0 0.0
    %488 = vmatprep.subr.mxu0 0.0
    %489 = vmatpush1.msra.mxu0 0.0
    %490 = vmatprep.subr.mxu0 0.0
    %491 = vmatpush1.msra.mxu0 0.0
    %492 = vmatprep.subr.mxu0 0.0
    %493 = vmatpush1.msra.mxu0 0.0
    %494 = vmatprep.subr.mxu0 0.0
    %495 = vmatpush1.msra.mxu0 0.0
    %496 = vmatprep.subr.mxu0 0.0
    %497 = vmatpush1.msra.mxu0 0.0
    %498 = vmatprep.subr.mxu0 0.0
    %499 = vmatpush1.msra.mxu0 0.0
    %500 = vmatprep.subr.mxu0 0.0
    %501 = vmatpush1.msra.mxu0 0.0
    %502 = vmatprep.subr.mxu0 0.0
    %503 = vmatpush1.msra.mxu0 0.0
    %504 = vmatprep.subr.mxu0 0.0
    %505 = vmatpush1.msra.mxu0 0.0
    %506 = vmatprep.subr.mxu0 0.0
    %507 = vmatpush1.msra.mxu0 0.0
    %508 = vmatprep.subr.mxu0 0.0
    %509 = vmatpush1.msra.mxu0 0.0
    %510 = vmatprep.subr.mxu0 0.0
    %511 = vmatpush1.msra.mxu0 0.0
    %512 = vmatprep.subr.mxu0 0.0
    %513 = vmatpush1.msra.mxu0 0.0
    %514 = vmatprep.subr.mxu0 0.0
    %515 = vmatpush1.msra.mxu0 0.0
    %516 = vmatprep.subr.mxu0 0.0
    %517 = vmatpush1.msra.mxu0 0.0
    %518 = vmatprep.subr.mxu0 0.0
    %519 = vmatpush1.msra.mxu0 0.0
    %520 = vmatprep.subr.mxu0 0.0
    %521 = vmatpush1.msra.mxu0 0.0
    %522 = vmatprep.subr.mxu0 0.0
    %523 = vmatpush1.msra.mxu0 0.0
    %524 = vmatprep.subr.mxu0 0.0
    %525 = vmatpush1.msra.mxu0 0.0
    %526 = vmatprep.subr.mxu0 0.0
    %527 = vmatpush1.msra.mxu0 0.0
    %528 = vmatprep.subr.mxu0 0.0
    %529 = vmatpush1.msra.mxu0 0.0
    %530 = vmatprep.mubr.f32.mxu0 0.0
    %531 = vmatmul.mubr.f32.gmra.mrb[0].mxu0 %v461
    %v532 = vpop.f32.mrb[0].mxu0
    %v533 = vadd.f32 0.0, %v532
    %v534 = vpop.f32.mrb[0].mxu0
    %535 = vmatprep.mubr.f32.mxu0 0.0
    %536 = vmatmul.mubr.f32.gmra.mrb[0].mxu0 %v464
    %v537 = vpop.f32.mrb[0].mxu0
    %v538 = vadd.f32 0.0, %v537
    %v539 = vpop.f32.mrb[0].mxu0
    %540 = vdwg.mxu0
    %541 = vrot.lane.b32.xlu0 %v239, 104
    %v542 = vpop.permute.xlu0 %541
    %543 = vrot.lane.b32.xlu0 %v240, 104
    %v544 = vpop.permute.xlu0 %543
    %547 = vrot.lane.b32.xlu0 %v210, 120
    %v548 = vpop.permute.xlu0 %547
    %549 = vrot.lane.b32.xlu0 %v215, 120
    %v550 = vpop.permute.xlu0 %549
    %v553 = vsel %vm257, %v542, %v548
    %v554 = vsel %vm257, %v544, %v550
    %555 = vrot.lane.b32.xlu0 %v228, 16
    %v556 = vpop.permute.xlu0 %555
    %557 = vrot.lane.b32.xlu0 %v229, 16
    %v558 = vpop.permute.xlu0 %557
    %v561 = vmul.f32 %v210, %v556
    %v562 = vmul.f32 %v215, %v558
    %v563 = vmul.f32 %v553, %v230
    %v564 = vmul.f32 %v554, %v231
    %567 = vrot.lane.b32.xlu0 %v563, 16
    %v568 = vpop.permute.xlu0 %567
    %569 = vrot.lane.b32.xlu0 %v564, 16
    %v570 = vpop.permute.xlu0 %569
    %v573 = vadd.f32 %v561, %v568
    %v574 = vadd.f32 %v562, %v570
    %577 = vrot.lane.b32.xlu0 %v573, 112
    %v578 = vpop.permute.xlu0 %577
    %579 = vrot.lane.b32.xlu0 %v574, 112
    %v580 = vpop.permute.xlu0 %579
    %v581 = vsel %vm342, %v578, 0
    %v583 = vsel %vm342, %v580, 0
    %585 = vmatprep.subr.mxu0 0.0
    %586 = vmatpush1.xpose.msra.mxu0 %v349
    %587 = vmatprep.subr.mxu0 0.0
    %588 = vmatpush1.xpose.msra.mxu0 %v351
    %589 = vmatprep.subr.mxu0 0.0
    %590 = vmatpush1.xpose.msra.mxu0 0.0
    %591 = vmatprep.subr.mxu0 0.0
    %592 = vmatpush1.xpose.msra.mxu0 0.0
    %593 = vmatprep.subr.mxu0 0.0
    %594 = vmatpush1.xpose.msra.mxu0 0.0
    %595 = vmatprep.subr.mxu0 0.0
    %596 = vmatpush1.xpose.msra.mxu0 0.0
    %597 = vmatprep.subr.mxu0 0.0
    %598 = vmatpush1.xpose.msra.mxu0 0.0
    %599 = vmatprep.subr.mxu0 0.0
    %600 = vmatpush1.xpose.msra.mxu0 0.0
    %601 = vmatprep.subr.mxu0 0.0
    %602 = vmatpush1.xpose.msra.mxu0 0.0
    %603 = vmatprep.subr.mxu0 0.0
    %604 = vmatpush1.xpose.msra.mxu0 0.0
    %605 = vmatprep.subr.mxu0 0.0
    %606 = vmatpush1.xpose.msra.mxu0 0.0
    %607 = vmatprep.subr.mxu0 0.0
    %608 = vmatpush1.xpose.msra.mxu0 0.0
    %609 = vmatprep.subr.mxu0 0.0
    %610 = vmatpush1.xpose.msra.mxu0 0.0
    %611 = vmatprep.subr.mxu0 0.0
    %612 = vmatpush1.xpose.msra.mxu0 0.0
    %613 = vmatprep.subr.mxu0 0.0
    %614 = vmatpush1.xpose.msra.mxu0 0.0
    %615 = vmatprep.subr.mxu0 0.0
    %616 = vmatpush1.xpose.msra.mxu0 0.0
    %617 = vmatprep.subr.mxu0 0.0
    %618 = vmatpush1.xpose.msra.mxu0 0.0
    %619 = vmatprep.subr.mxu0 0.0
    %620 = vmatpush1.xpose.msra.mxu0 0.0
    %621 = vmatprep.subr.mxu0 0.0
    %622 = vmatpush1.xpose.msra.mxu0 0.0
    %623 = vmatprep.subr.mxu0 0.0
    %624 = vmatpush1.xpose.msra.mxu0 0.0
    %625 = vmatprep.subr.mxu0 0.0
    %626 = vmatpush1.xpose.msra.mxu0 0.0
    %627 = vmatprep.subr.mxu0 0.0
    %628 = vmatpush1.xpose.msra.mxu0 0.0
    %629 = vmatprep.subr.mxu0 0.0
    %630 = vmatpush1.xpose.msra.mxu0 0.0
    %631 = vmatprep.subr.mxu0 0.0
    %632 = vmatpush1.xpose.msra.mxu0 0.0
    %633 = vmatprep.subr.mxu0 0.0
    %634 = vmatpush1.xpose.msra.mxu0 0.0
    %635 = vmatprep.subr.mxu0 0.0
    %636 = vmatpush1.xpose.msra.mxu0 0.0
    %637 = vmatprep.subr.mxu0 0.0
    %638 = vmatpush1.xpose.msra.mxu0 0.0
    %639 = vmatprep.subr.mxu0 0.0
    %640 = vmatpush1.xpose.msra.mxu0 0.0
    %641 = vmatprep.subr.mxu0 0.0
    %642 = vmatpush1.xpose.msra.mxu0 0.0
    %643 = vmatprep.subr.mxu0 0.0
    %644 = vmatpush1.xpose.msra.mxu0 0.0
    %645 = vmatprep.subr.mxu0 0.0
    %646 = vmatpush1.xpose.msra.mxu0 0.0
    %647 = vmatprep.subr.mxu0 0.0
    %648 = vmatpush1.xpose.msra.mxu0 0.0
    %649 = vmatprep.mubr.f32.mxu0 0.0
    %650 = vmatmul.mubr.f32.gmra.mrb[0].mxu0 %v581
    %v651 = vpop.f32.mrb[0].mxu0
    %v652 = vadd.f32 0.0, %v651
    %v653 = vpop.f32.mrb[0].mxu0
    %654 = vmatprep.mubr.f32.mxu0 0.0
    %655 = vmatmul.mubr.f32.gmra.mrb[0].mxu0 %v583
    %v656 = vpop.f32.mrb[0].mxu0
    %v657 = vadd.f32 0.0, %v656
    %v658 = vpop.f32.mrb[0].mxu0
    %659 = vdwg.mxu0
    %v660 = vmul.f32 %v652, 0.25
    %v661 = vmul.f32 %v657, 0.25
    %v662 = vsel %vm237, %v660, -inf
    %v663 = vsel %vm238, %v661, -inf
    %v664 = vsel %vm342, %v662, -inf
    %665 = vmax.xlane.f32.xlu0 %v664
    %v666 = vpop.xlane.xlu0 %665
    %v667 = vsel %vm342, %v663, -inf
    %668 = vmax.xlane.f32.xlu0 %v667
    %v669 = vpop.xlane.xlu0 %668
    %v670 = vsub.f32 %v662, %v666
    %v671 = vsub.f32 %v663, %v669
    %v672 = vmul.f32 %v670, 1.442695
    %v673 = vpow.pop %v672
    %v674 = vmul.f32 %v671, 1.442695
    %v675 = vpow.pop %v674
    %v676 = vsel %vm342, %v673, 0.0
    %677 = vadd.xlane.f32.xlu0 %v676
    %v678 = vpop.xlane.xlu0 %677
    %v679 = vsel %vm342, %v675, 0.0
    %680 = vadd.xlane.f32.xlu0 %v679
    %v681 = vpop.xlane.xlu0 %680
    %v682 = vrcp.pop %v678
    %v683 = vrcp.pop %v681
    %v684 = vmul.f32 %v673, %v682
    %v685 = vmul.f32 %v675, %v683
    %v687 = vsel %vm342, %v684, 0
    %v690 = vsel %vm342, %v685, 0
    %692 = vmatprep.subr.mxu0 0.0
    %693 = vmatpush1.msra.mxu0 %v455
    %694 = vmatprep.subr.mxu0 0.0
    %695 = vmatpush1.msra.mxu0 %v457
    %696 = vmatprep.subr.mxu0 0.0
    %697 = vmatpush1.msra.mxu0 0.0
    %698 = vmatprep.subr.mxu0 0.0
    %699 = vmatpush1.msra.mxu0 0.0
    %700 = vmatprep.subr.mxu0 0.0
    %701 = vmatpush1.msra.mxu0 0.0
    %702 = vmatprep.subr.mxu0 0.0
    %703 = vmatpush1.msra.mxu0 0.0
    %704 = vmatprep.subr.mxu0 0.0
    %705 = vmatpush1.msra.mxu0 0.0
    %706 = vmatprep.subr.mxu0 0.0
    %707 = vmatpush1.msra.mxu0 0.0
    %708 = vmatprep.subr.mxu0 0.0
    %709 = vmatpush1.msra.mxu0 0.0
    %710 = vmatprep.subr.mxu0 0.0
    %711 = vmatpush1.msra.mxu0 0.0
    %712 = vmatprep.subr.mxu0 0.0
    %713 = vmatpush1.msra.mxu0 0.0
    %714 = vmatprep.subr.mxu0 0.0
    %715 = vmatpush1.msra.mxu0 0.0
    %716 = vmatprep.subr.mxu0 0.0
    %717 = vmatpush1.msra.mxu0 0.0
    %718 = vmatprep.subr.mxu0 0.0
    %719 = vmatpush1.msra.mxu0 0.0
    %720 = vmatprep.subr.mxu0 0.0
    %721 = vmatpush1.msra.mxu0 0.0
    %722 = vmatprep.subr.mxu0 0.0
    %723 = vmatpush1.msra.mxu0 0.0
    %724 = vmatprep.subr.mxu0 0.0
    %725 = vmatpush1.msra.mxu0 0.0
    %726 = vmatprep.subr.mxu0 0.0
    %727 = vmatpush1.msra.mxu0 0.0
    %728 = vmatprep.subr.mxu0 0.0
    %729 = vmatpush1.msra.mxu0 0.0
    %730 = vmatprep.subr.mxu0 0.0
    %731 = vmatpush1.msra.mxu0 0.0
    %732 = vmatprep.subr.mxu0 0.0
    %733 = vmatpush1.msra.mxu0 0.0
    %734 = vmatprep.subr.mxu0 0.0
    %735 = vmatpush1.msra.mxu0 0.0
    %736 = vmatprep.subr.mxu0 0.0
    %737 = vmatpush1.msra.mxu0 0.0
    %738 = vmatprep.subr.mxu0 0.0
    %739 = vmatpush1.msra.mxu0 0.0
    %740 = vmatprep.subr.mxu0 0.0
    %741 = vmatpush1.msra.mxu0 0.0
    %742 = vmatprep.subr.mxu0 0.0
    %743 = vmatpush1.msra.mxu0 0.0
    %744 = vmatprep.subr.mxu0 0.0
    %745 = vmatpush1.msra.mxu0 0.0
    %746 = vmatprep.subr.mxu0 0.0
    %747 = vmatpush1.msra.mxu0 0.0
    %748 = vmatprep.subr.mxu0 0.0
    %749 = vmatpush1.msra.mxu0 0.0
    %750 = vmatprep.subr.mxu0 0.0
    %751 = vmatpush1.msra.mxu0 0.0
    %752 = vmatprep.subr.mxu0 0.0
    %753 = vmatpush1.msra.mxu0 0.0
    %754 = vmatprep.subr.mxu0 0.0
    %755 = vmatpush1.msra.mxu0 0.0
    %756 = vmatprep.mubr.f32.mxu0 0.0
    %757 = vmatmul.mubr.f32.gmra.mrb[0].mxu0 %v687
    %v758 = vpop.f32.mrb[0].mxu0
    %v759 = vadd.f32 0.0, %v758
    %v760 = vpop.f32.mrb[0].mxu0
    %761 = vmatprep.mubr.f32.mxu0 0.0
    %762 = vmatmul.mubr.f32.gmra.mrb[0].mxu0 %v690
    %v763 = vpop.f32.mrb[0].mxu0
    %v764 = vadd.f32 0.0, %v763
    %v765 = vpop.f32.mrb[0].mxu0
    %766 = vdwg.mxu0
    %767 = vrot.lane.b32.xlu0 %v239, 88
    %v768 = vpop.permute.xlu0 %767
    %769 = vrot.lane.b32.xlu0 %v240, 88
    %v770 = vpop.permute.xlu0 %769
    %773 = vrot.lane.b32.xlu0 %v210, 104
    %v774 = vpop.permute.xlu0 %773
    %775 = vrot.lane.b32.xlu0 %v215, 104
    %v776 = vpop.permute.xlu0 %775
    %v779 = vsel %vm257, %v768, %v774
    %v780 = vsel %vm257, %v770, %v776
    %781 = vrot.lane.b32.xlu0 %v228, 32
    %v782 = vpop.permute.xlu0 %781
    %783 = vrot.lane.b32.xlu0 %v229, 32
    %v784 = vpop.permute.xlu0 %783
    %v787 = vmul.f32 %v210, %v782
    %v788 = vmul.f32 %v215, %v784
    %v789 = vmul.f32 %v779, %v230
    %v790 = vmul.f32 %v780, %v231
    %793 = vrot.lane.b32.xlu0 %v789, 32
    %v794 = vpop.permute.xlu0 %793
    %795 = vrot.lane.b32.xlu0 %v790, 32
    %v796 = vpop.permute.xlu0 %795
    %v799 = vadd.f32 %v787, %v794
    %v800 = vadd.f32 %v788, %v796
    %803 = vrot.lane.b32.xlu0 %v799, 96
    %v804 = vpop.permute.xlu0 %803
    %805 = vrot.lane.b32.xlu0 %v800, 96
    %v806 = vpop.permute.xlu0 %805
    %809 = vrot.lane.b32.xlu0 %v314, 48
    %v810 = vpop.permute.xlu0 %809
    %811 = vrot.lane.b32.xlu0 %v315, 48
    %v812 = vpop.permute.xlu0 %811
    %v813 = vsel %vm342, %v804, 0
    %v815 = vsel %vm342, %v806, 0
    %v817 = vsel %vm342, %v810, 0
    %v819 = vsel %vm342, %v812, 0
    %821 = vmatprep.subr.mxu0 0.0
    %822 = vmatpush1.xpose.msra.mxu0 %v817
    %823 = vmatprep.subr.mxu0 0.0
    %824 = vmatpush1.xpose.msra.mxu0 %v819
    %825 = vmatprep.subr.mxu0 0.0
    %826 = vmatpush1.xpose.msra.mxu0 0.0
    %827 = vmatprep.subr.mxu0 0.0
    %828 = vmatpush1.xpose.msra.mxu0 0.0
    %829 = vmatprep.subr.mxu0 0.0
    %830 = vmatpush1.xpose.msra.mxu0 0.0
    %831 = vmatprep.subr.mxu0 0.0
    %832 = vmatpush1.xpose.msra.mxu0 0.0
    %833 = vmatprep.subr.mxu0 0.0
    %834 = vmatpush1.xpose.msra.mxu0 0.0
    %835 = vmatprep.subr.mxu0 0.0
    %836 = vmatpush1.xpose.msra.mxu0 0.0
    %837 = vmatprep.subr.mxu0 0.0
    %838 = vmatpush1.xpose.msra.mxu0 0.0
    %839 = vmatprep.subr.mxu0 0.0
    %840 = vmatpush1.xpose.msra.mxu0 0.0
    %841 = vmatprep.subr.mxu0 0.0
    %842 = vmatpush1.xpose.msra.mxu0 0.0
    %843 = vmatprep.subr.mxu0 0.0
    %844 = vmatpush1.xpose.msra.mxu0 0.0
    %845 = vmatprep.subr.mxu0 0.0
    %846 = vmatpush1.xpose.msra.mxu0 0.0
    %847 = vmatprep.subr.mxu0 0.0
    %848 = vmatpush1.xpose.msra.mxu0 0.0
    %849 = vmatprep.subr.mxu0 0.0
    %850 = vmatpush1.xpose.msra.mxu0 0.0
    %851 = vmatprep.subr.mxu0 0.0
    %852 = vmatpush1.xpose.msra.mxu0 0.0
    %853 = vmatprep.subr.mxu0 0.0
    %854 = vmatpush1.xpose.msra.mxu0 0.0
    %855 = vmatprep.subr.mxu0 0.0
    %856 = vmatpush1.xpose.msra.mxu0 0.0
    %857 = vmatprep.subr.mxu0 0.0
    %858 = vmatpush1.xpose.msra.mxu0 0.0
    %859 = vmatprep.subr.mxu0 0.0
    %860 = vmatpush1.xpose.msra.mxu0 0.0
    %861 = vmatprep.subr.mxu0 0.0
    %862 = vmatpush1.xpose.msra.mxu0 0.0
    %863 = vmatprep.subr.mxu0 0.0
    %864 = vmatpush1.xpose.msra.mxu0 0.0
    %865 = vmatprep.subr.mxu0 0.0
    %866 = vmatpush1.xpose.msra.mxu0 0.0
    %867 = vmatprep.subr.mxu0 0.0
    %868 = vmatpush1.xpose.msra.mxu0 0.0
    %869 = vmatprep.subr.mxu0 0.0
    %870 = vmatpush1.xpose.msra.mxu0 0.0
    %871 = vmatprep.subr.mxu0 0.0
    %872 = vmatpush1.xpose.msra.mxu0 0.0
    %873 = vmatprep.subr.mxu0 0.0
    %874 = vmatpush1.xpose.msra.mxu0 0.0
    %875 = vmatprep.subr.mxu0 0.0
    %876 = vmatpush1.xpose.msra.mxu0 0.0
    %877 = vmatprep.subr.mxu0 0.0
    %878 = vmatpush1.xpose.msra.mxu0 0.0
    %879 = vmatprep.subr.mxu0 0.0
    %880 = vmatpush1.xpose.msra.mxu0 0.0
    %881 = vmatprep.subr.mxu0 0.0
    %882 = vmatpush1.xpose.msra.mxu0 0.0
    %883 = vmatprep.subr.mxu0 0.0
    %884 = vmatpush1.xpose.msra.mxu0 0.0
    %885 = vmatprep.mubr.f32.mxu0 0.0
    %886 = vmatmul.mubr.f32.gmra.mrb[0].mxu0 %v813
    %v887 = vpop.f32.mrb[0].mxu0
    %v888 = vadd.f32 0.0, %v887
    %v889 = vpop.f32.mrb[0].mxu0
    %890 = vmatprep.mubr.f32.mxu0 0.0
    %891 = vmatmul.mubr.f32.gmra.mrb[0].mxu0 %v815
    %v892 = vpop.f32.mrb[0].mxu0
    %v893 = vadd.f32 0.0, %v892
    %v894 = vpop.f32.mrb[0].mxu0
    %895 = vdwg.mxu0
    %v896 = vmul.f32 %v888, 0.25
    %v897 = vmul.f32 %v893, 0.25
    %v898 = vsel %vm237, %v896, -inf
    %v899 = vsel %vm238, %v897, -inf
    %v900 = vsel %vm342, %v898, -inf
    %901 = vmax.xlane.f32.xlu0 %v900
    %v902 = vpop.xlane.xlu0 %901
    %v903 = vsel %vm342, %v899, -inf
    %904 = vmax.xlane.f32.xlu0 %v903
    %v905 = vpop.xlane.xlu0 %904
    %v906 = vsub.f32 %v898, %v902
    %v907 = vsub.f32 %v899, %v905
    %v908 = vmul.f32 %v906, 1.442695
    %v909 = vpow.pop %v908
    %v910 = vmul.f32 %v907, 1.442695
    %v911 = vpow.pop %v910
    %v912 = vsel %vm342, %v909, 0.0
    %913 = vadd.xlane.f32.xlu0 %v912
    %v914 = vpop.xlane.xlu0 %913
    %v915 = vsel %vm342, %v911, 0.0
    %916 = vadd.xlane.f32.xlu0 %v915
    %v917 = vpop.xlane.xlu0 %916
    %v918 = vrcp.pop %v914
    %v919 = vrcp.pop %v917
    %v920 = vmul.f32 %v909, %v918
    %v921 = vmul.f32 %v911, %v919
    %922 = vrot.lane.b32.xlu0 %v210, 16
    %v923 = vpop.permute.xlu0 %922
    %924 = vrot.lane.b32.xlu0 %v215, 16
    %v925 = vpop.permute.xlu0 %924
    %v929 = vsel %vm342, %v920, 0
    %v932 = vsel %vm342, %v921, 0
    %934 = vmatprep.subr.mxu0 0.0
    %935 = vmatpush1.msra.mxu0 %v923
    %936 = vmatprep.subr.mxu0 0.0
    %937 = vmatpush1.msra.mxu0 %v925
    %938 = vmatprep.subr.mxu0 0.0
    %939 = vmatpush1.msra.mxu0 0.0
    %940 = vmatprep.subr.mxu0 0.0
    %941 = vmatpush1.msra.mxu0 0.0
    %942 = vmatprep.subr.mxu0 0.0
    %943 = vmatpush1.msra.mxu0 0.0
    %944 = vmatprep.subr.mxu0 0.0
    %945 = vmatpush1.msra.mxu0 0.0
    %946 = vmatprep.subr.mxu0 0.0
    %947 = vmatpush1.msra.mxu0 0.0
    %948 = vmatprep.subr.mxu0 0.0
    %949 = vmatpush1.msra.mxu0 0.0
    %950 = vmatprep.subr.mxu0 0.0
    %951 = vmatpush1.msra.mxu0 0.0
    %952 = vmatprep.subr.mxu0 0.0
    %953 = vmatpush1.msra.mxu0 0.0
    %954 = vmatprep.subr.mxu0 0.0
    %955 = vmatpush1.msra.mxu0 0.0
    %956 = vmatprep.subr.mxu0 0.0
    %957 = vmatpush1.msra.mxu0 0.0
    %958 = vmatprep.subr.mxu0 0.0
    %959 = vmatpush1.msra.mxu0 0.0
    %960 = vmatprep.subr.mxu0 0.0
    %961 = vmatpush1.msra.mxu0 0.0
    %962 = vmatprep.subr.mxu0 0.0
    %963 = vmatpush1.msra.mxu0 0.0
    %964 = vmatprep.subr.mxu0 0.0
    %965 = vmatpush1.msra.mxu0 0.0
    %966 = vmatprep.subr.mxu0 0.0
    %967 = vmatpush1.msra.mxu0 0.0
    %968 = vmatprep.subr.mxu0 0.0
    %969 = vmatpush1.msra.mxu0 0.0
    %970 = vmatprep.subr.mxu0 0.0
    %971 = vmatpush1.msra.mxu0 0.0
    %972 = vmatprep.subr.mxu0 0.0
    %973 = vmatpush1.msra.mxu0 0.0
    %974 = vmatprep.subr.mxu0 0.0
    %975 = vmatpush1.msra.mxu0 0.0
    %976 = vmatprep.subr.mxu0 0.0
    %977 = vmatpush1.msra.mxu0 0.0
    %978 = vmatprep.subr.mxu0 0.0
    %979 = vmatpush1.msra.mxu0 0.0
    %980 = vmatprep.subr.mxu0 0.0
    %981 = vmatpush1.msra.mxu0 0.0
    %982 = vmatprep.subr.mxu0 0.0
    %983 = vmatpush1.msra.mxu0 0.0
    %984 = vmatprep.subr.mxu0 0.0
    %985 = vmatpush1.msra.mxu0 0.0
    %986 = vmatprep.subr.mxu0 0.0
    %987 = vmatpush1.msra.mxu0 0.0
    %988 = vmatprep.subr.mxu0 0.0
    %989 = vmatpush1.msra.mxu0 0.0
    %990 = vmatprep.subr.mxu0 0.0
    %991 = vmatpush1.msra.mxu0 0.0
    %992 = vmatprep.subr.mxu0 0.0
    %993 = vmatpush1.msra.mxu0 0.0
    %994 = vmatprep.subr.mxu0 0.0
    %995 = vmatpush1.msra.mxu0 0.0
    %996 = vmatprep.subr.mxu0 0.0
    %997 = vmatpush1.msra.mxu0 0.0
    %998 = vmatprep.mubr.f32.mxu0 0.0
    %999 = vmatmul.mubr.f32.gmra.mrb[0].mxu0 %v929
    %v1000 = vpop.f32.mrb[0].mxu0
    %v1001 = vadd.f32 0.0, %v1000
    %v1002 = vpop.f32.mrb[0].mxu0
    %1003 = vmatprep.mubr.f32.mxu0 0.0
    %1004 = vmatmul.mubr.f32.gmra.mrb[0].mxu0 %v932
    %v1005 = vpop.f32.mrb[0].mxu0
    %v1006 = vadd.f32 0.0, %v1005
    %v1007 = vpop.f32.mrb[0].mxu0
    %1008 = vdwg.mxu0
    %1009 = vrot.lane.b32.xlu0 %v239, 72
    %v1010 = vpop.permute.xlu0 %1009
    %1011 = vrot.lane.b32.xlu0 %v240, 72
    %v1012 = vpop.permute.xlu0 %1011
    %1015 = vrot.lane.b32.xlu0 %v210, 88
    %v1016 = vpop.permute.xlu0 %1015
    %1017 = vrot.lane.b32.xlu0 %v215, 88
    %v1018 = vpop.permute.xlu0 %1017
    %v1021 = vsel %vm257, %v1010, %v1016
    %v1022 = vsel %vm257, %v1012, %v1018
    %1023 = vrot.lane.b32.xlu0 %v228, 48
    %v1024 = vpop.permute.xlu0 %1023
    %1025 = vrot.lane.b32.xlu0 %v229, 48
    %v1026 = vpop.permute.xlu0 %1025
    %v1029 = vmul.f32 %v210, %v1024
    %v1030 = vmul.f32 %v215, %v1026
    %v1031 = vmul.f32 %v1021, %v230
    %v1032 = vmul.f32 %v1022, %v231
    %1035 = vrot.lane.b32.xlu0 %v1031, 48
    %v1036 = vpop.permute.xlu0 %1035
    %1037 = vrot.lane.b32.xlu0 %v1032, 48
    %v1038 = vpop.permute.xlu0 %1037
    %v1041 = vadd.f32 %v1029, %v1036
    %v1042 = vadd.f32 %v1030, %v1038
    %1045 = vrot.lane.b32.xlu0 %v1041, 80
    %v1046 = vpop.permute.xlu0 %1045
    %1047 = vrot.lane.b32.xlu0 %v1042, 80
    %v1048 = vpop.permute.xlu0 %1047
    %v1049 = vsel %vm342, %v1046, 0
    %v1051 = vsel %vm342, %v1048, 0
    %1053 = vmatprep.subr.mxu0 0.0
    %1054 = vmatpush1.xpose.msra.mxu0 %v817
    %1055 = vmatprep.subr.mxu0 0.0
    %1056 = vmatpush1.xpose.msra.mxu0 %v819
    %1057 = vmatprep.subr.mxu0 0.0
    %1058 = vmatpush1.xpose.msra.mxu0 0.0
    %1059 = vmatprep.subr.mxu0 0.0
    %1060 = vmatpush1.xpose.msra.mxu0 0.0
    %1061 = vmatprep.subr.mxu0 0.0
    %1062 = vmatpush1.xpose.msra.mxu0 0.0
    %1063 = vmatprep.subr.mxu0 0.0
    %1064 = vmatpush1.xpose.msra.mxu0 0.0
    %1065 = vmatprep.subr.mxu0 0.0
    %1066 = vmatpush1.xpose.msra.mxu0 0.0
    %1067 = vmatprep.subr.mxu0 0.0
    %1068 = vmatpush1.xpose.msra.mxu0 0.0
    %1069 = vmatprep.subr.mxu0 0.0
    %1070 = vmatpush1.xpose.msra.mxu0 0.0
    %1071 = vmatprep.subr.mxu0 0.0
    %1072 = vmatpush1.xpose.msra.mxu0 0.0
    %1073 = vmatprep.subr.mxu0 0.0
    %1074 = vmatpush1.xpose.msra.mxu0 0.0
    %1075 = vmatprep.subr.mxu0 0.0
    %1076 = vmatpush1.xpose.msra.mxu0 0.0
    %1077 = vmatprep.subr.mxu0 0.0
    %1078 = vmatpush1.xpose.msra.mxu0 0.0
    %1079 = vmatprep.subr.mxu0 0.0
    %1080 = vmatpush1.xpose.msra.mxu0 0.0
    %1081 = vmatprep.subr.mxu0 0.0
    %1082 = vmatpush1.xpose.msra.mxu0 0.0
    %1083 = vmatprep.subr.mxu0 0.0
    %1084 = vmatpush1.xpose.msra.mxu0 0.0
    %1085 = vmatprep.subr.mxu0 0.0
    %1086 = vmatpush1.xpose.msra.mxu0 0.0
    %1087 = vmatprep.subr.mxu0 0.0
    %1088 = vmatpush1.xpose.msra.mxu0 0.0
    %1089 = vmatprep.subr.mxu0 0.0
    %1090 = vmatpush1.xpose.msra.mxu0 0.0
    %1091 = vmatprep.subr.mxu0 0.0
    %1092 = vmatpush1.xpose.msra.mxu0 0.0
    %1093 = vmatprep.subr.mxu0 0.0
    %1094 = vmatpush1.xpose.msra.mxu0 0.0
    %1095 = vmatprep.subr.mxu0 0.0
    %1096 = vmatpush1.xpose.msra.mxu0 0.0
    %1097 = vmatprep.subr.mxu0 0.0
    %1098 = vmatpush1.xpose.msra.mxu0 0.0
    %1099 = vmatprep.subr.mxu0 0.0
    %1100 = vmatpush1.xpose.msra.mxu0 0.0
    %1101 = vmatprep.subr.mxu0 0.0
    %1102 = vmatpush1.xpose.msra.mxu0 0.0
    %1103 = vmatprep.subr.mxu0 0.0
    %1104 = vmatpush1.xpose.msra.mxu0 0.0
    %1105 = vmatprep.subr.mxu0 0.0
    %1106 = vmatpush1.xpose.msra.mxu0 0.0
    %1107 = vmatprep.subr.mxu0 0.0
    %1108 = vmatpush1.xpose.msra.mxu0 0.0
    %1109 = vmatprep.subr.mxu0 0.0
    %1110 = vmatpush1.xpose.msra.mxu0 0.0
    %1111 = vmatprep.subr.mxu0 0.0
    %1112 = vmatpush1.xpose.msra.mxu0 0.0
    %1113 = vmatprep.subr.mxu0 0.0
    %1114 = vmatpush1.xpose.msra.mxu0 0.0
    %1115 = vmatprep.subr.mxu0 0.0
    %1116 = vmatpush1.xpose.msra.mxu0 0.0
    %1117 = vmatprep.mubr.f32.mxu0 0.0
    %1118 = vmatmul.mubr.f32.gmra.mrb[0].mxu0 %v1049
    %v1119 = vpop.f32.mrb[0].mxu0
    %v1120 = vadd.f32 0.0, %v1119
    %v1121 = vpop.f32.mrb[0].mxu0
    %1122 = vmatprep.mubr.f32.mxu0 0.0
    %1123 = vmatmul.mubr.f32.gmra.mrb[0].mxu0 %v1051
    %v1124 = vpop.f32.mrb[0].mxu0
    %v1125 = vadd.f32 0.0, %v1124
    %v1126 = vpop.f32.mrb[0].mxu0
    %1127 = vdwg.mxu0
    %v1128 = vmul.f32 %v1120, 0.25
    %v1129 = vmul.f32 %v1125, 0.25
    %v1130 = vsel %vm237, %v1128, -inf
    %v1131 = vsel %vm238, %v1129, -inf
    %v1132 = vsel %vm342, %v1130, -inf
    %1133 = vmax.xlane.f32.xlu0 %v1132
    %v1134 = vpop.xlane.xlu0 %1133
    %v1135 = vsel %vm342, %v1131, -inf
    %1136 = vmax.xlane.f32.xlu0 %v1135
    %v1137 = vpop.xlane.xlu0 %1136
    %v1138 = vsub.f32 %v1130, %v1134
    %v1139 = vsub.f32 %v1131, %v1137
    %v1140 = vmul.f32 %v1138, 1.442695
    %v1141 = vpow.pop %v1140
    %v1142 = vmul.f32 %v1139, 1.442695
    %v1143 = vpow.pop %v1142
    %v1144 = vsel %vm342, %v1141, 0.0
    %1145 = vadd.xlane.f32.xlu0 %v1144
    %v1146 = vpop.xlane.xlu0 %1145
    %v1147 = vsel %vm342, %v1143, 0.0
    %1148 = vadd.xlane.f32.xlu0 %v1147
    %v1149 = vpop.xlane.xlu0 %1148
    %v1150 = vrcp.pop %v1146
    %v1151 = vrcp.pop %v1149
    %v1152 = vmul.f32 %v1141, %v1150
    %v1153 = vmul.f32 %v1143, %v1151
    %v1155 = vsel %vm342, %v1152, 0
    %v1158 = vsel %vm342, %v1153, 0
    %1160 = vmatprep.subr.mxu0 0.0
    %1161 = vmatpush1.msra.mxu0 %v923
    %1162 = vmatprep.subr.mxu0 0.0
    %1163 = vmatpush1.msra.mxu0 %v925
    %1164 = vmatprep.subr.mxu0 0.0
    %1165 = vmatpush1.msra.mxu0 0.0
    %1166 = vmatprep.subr.mxu0 0.0
    %1167 = vmatpush1.msra.mxu0 0.0
    %1168 = vmatprep.subr.mxu0 0.0
    %1169 = vmatpush1.msra.mxu0 0.0
    %1170 = vmatprep.subr.mxu0 0.0
    %1171 = vmatpush1.msra.mxu0 0.0
    %1172 = vmatprep.subr.mxu0 0.0
    %1173 = vmatpush1.msra.mxu0 0.0
    %1174 = vmatprep.subr.mxu0 0.0
    %1175 = vmatpush1.msra.mxu0 0.0
    %1176 = vmatprep.subr.mxu0 0.0
    %1177 = vmatpush1.msra.mxu0 0.0
    %1178 = vmatprep.subr.mxu0 0.0
    %1179 = vmatpush1.msra.mxu0 0.0
    %1180 = vmatprep.subr.mxu0 0.0
    %1181 = vmatpush1.msra.mxu0 0.0
    %1182 = vmatprep.subr.mxu0 0.0
    %1183 = vmatpush1.msra.mxu0 0.0
    %1184 = vmatprep.subr.mxu0 0.0
    %1185 = vmatpush1.msra.mxu0 0.0
    %1186 = vmatprep.subr.mxu0 0.0
    %1187 = vmatpush1.msra.mxu0 0.0
    %1188 = vmatprep.subr.mxu0 0.0
    %1189 = vmatpush1.msra.mxu0 0.0
    %1190 = vmatprep.subr.mxu0 0.0
    %1191 = vmatpush1.msra.mxu0 0.0
    %1192 = vmatprep.subr.mxu0 0.0
    %1193 = vmatpush1.msra.mxu0 0.0
    %1194 = vmatprep.subr.mxu0 0.0
    %1195 = vmatpush1.msra.mxu0 0.0
    %1196 = vmatprep.subr.mxu0 0.0
    %1197 = vmatpush1.msra.mxu0 0.0
    %1198 = vmatprep.subr.mxu0 0.0
    %1199 = vmatpush1.msra.mxu0 0.0
    %1200 = vmatprep.subr.mxu0 0.0
    %1201 = vmatpush1.msra.mxu0 0.0
    %1202 = vmatprep.subr.mxu0 0.0
    %1203 = vmatpush1.msra.mxu0 0.0
    %1204 = vmatprep.subr.mxu0 0.0
    %1205 = vmatpush1.msra.mxu0 0.0
    %1206 = vmatprep.subr.mxu0 0.0
    %1207 = vmatpush1.msra.mxu0 0.0
    %1208 = vmatprep.subr.mxu0 0.0
    %1209 = vmatpush1.msra.mxu0 0.0
    %1210 = vmatprep.subr.mxu0 0.0
    %1211 = vmatpush1.msra.mxu0 0.0
    %1212 = vmatprep.subr.mxu0 0.0
    %1213 = vmatpush1.msra.mxu0 0.0
    %1214 = vmatprep.subr.mxu0 0.0
    %1215 = vmatpush1.msra.mxu0 0.0
    %1216 = vmatprep.subr.mxu0 0.0
    %1217 = vmatpush1.msra.mxu0 0.0
    %1218 = vmatprep.subr.mxu0 0.0
    %1219 = vmatpush1.msra.mxu0 0.0
    %1220 = vmatprep.subr.mxu0 0.0
    %1221 = vmatpush1.msra.mxu0 0.0
    %1222 = vmatprep.subr.mxu0 0.0
    %1223 = vmatpush1.msra.mxu0 0.0
    %1224 = vmatprep.mubr.f32.mxu0 0.0
    %1225 = vmatmul.mubr.f32.gmra.mrb[0].mxu0 %v1155
    %v1226 = vpop.f32.mrb[0].mxu0
    %v1227 = vadd.f32 0.0, %v1226
    %v1228 = vpop.f32.mrb[0].mxu0
    %1229 = vmatprep.mubr.f32.mxu0 0.0
    %1230 = vmatmul.mubr.f32.gmra.mrb[0].mxu0 %v1158
    %v1231 = vpop.f32.mrb[0].mxu0
    %v1232 = vadd.f32 0.0, %v1231
    %v1233 = vpop.f32.mrb[0].mxu0
    %1234 = vdwg.mxu0
    %1237 = vrot.lane.b32.xlu0 %v759, 16
    %v1238 = vpop.permute.xlu0 %1237
    %1239 = vrot.lane.b32.xlu0 %v764, 16
    %v1240 = vpop.permute.xlu0 %1239
    %1245 = vrot.lane.b32.xlu0 %v1001, 32
    %v1246 = vpop.permute.xlu0 %1245
    %1247 = vrot.lane.b32.xlu0 %v1006, 32
    %v1248 = vpop.permute.xlu0 %1247
    %1253 = vrot.lane.b32.xlu0 %v1227, 48
    %v1254 = vpop.permute.xlu0 %1253
    %1255 = vrot.lane.b32.xlu0 %v1232, 48
    %v1256 = vpop.permute.xlu0 %1255
    %v1259 = vsel %vm342, %v533, %v1238
    %v1260 = vsel %vm342, %v538, %v1240
    %vm1261 = vcmask 261120
    %v1262 = vsel %vm1261, %v1259, %v1246
    %v1263 = vsel %vm1261, %v1260, %v1248
    %vm1264 = vcmask 392192
    %v1265 = vsel %vm1264, %v1262, %v1254
    %v1266 = vsel %vm1264, %v1263, %v1256
    %v1267 = vsub.f32 0.0, %v220
    %v1268 = vsub.f32 0.0, %v225
    %1271 = vrot.lane.b32.xlu0 %v1267, 56
    %v1272 = vpop.permute.xlu0 %1271
    %1273 = vrot.lane.b32.xlu0 %v1268, 56
    %v1274 = vpop.permute.xlu0 %1273
    %1279 = vrot.lane.b32.xlu0 %v220, 72
    %v1280 = vpop.permute.xlu0 %1279
    %1281 = vrot.lane.b32.xlu0 %v225, 72
    %v1282 = vpop.permute.xlu0 %1281
    %v1285 = vsel %vm257, %v1272, %v1280
    %v1286 = vsel %vm257, %v1274, %v1282
    %v1287 = vmul.f32 %v220, %v263
    %v1288 = vmul.f32 %v225, %v265
    %v1289 = vmul.f32 %v1285, %v230
    %v1290 = vmul.f32 %v1286, %v231
    %1293 = vrot.lane.b32.xlu0 %v1289, 64
    %v1294 = vpop.permute.xlu0 %1293
    %1295 = vrot.lane.b32.xlu0 %v1290, 64
    %v1296 = vpop.permute.xlu0 %1295
    %v1299 = vadd.f32 %v1287, %v1294
    %v1300 = vadd.f32 %v1288, %v1296
    %1301 = vrot.lane.b32.xlu0 %v1267, 40
    %v1302 = vpop.permute.xlu0 %1301
    %1303 = vrot.lane.b32.xlu0 %v1268, 40
    %v1304 = vpop.permute.xlu0 %1303
    %1307 = vrot.lane.b32.xlu0 %v220, 56
    %v1308 = vpop.permute.xlu0 %1307
    %1309 = vrot.lane.b32.xlu0 %v225, 56
    %v1310 = vpop.permute.xlu0 %1309
    %v1313 = vsel %vm257, %v1302, %v1308
    %v1314 = vsel %vm257, %v1304, %v1310
    %v1315 = vmul.f32 %v220, %v297
    %v1316 = vmul.f32 %v225, %v299
    %v1317 = vmul.f32 %v1313, %v230
    %v1318 = vmul.f32 %v1314, %v231
    %1321 = vrot.lane.b32.xlu0 %v1317, 80
    %v1322 = vpop.permute.xlu0 %1321
    %1323 = vrot.lane.b32.xlu0 %v1318, 80
    %v1324 = vpop.permute.xlu0 %1323
    %v1327 = vadd.f32 %v1315, %v1322
    %v1328 = vadd.f32 %v1316, %v1324
    %1329 = vrot.lane.b32.xlu0 %v1267, 120
    %v1330 = vpop.permute.xlu0 %1329
    %1331 = vrot.lane.b32.xlu0 %v1268, 120
    %v1332 = vpop.permute.xlu0 %1331
    %1335 = vrot.lane.b32.xlu0 %v220, 8
    %v1336 = vpop.permute.xlu0 %1335
    %1337 = vrot.lane.b32.xlu0 %v225, 8
    %v1338 = vpop.permute.xlu0 %1337
    %v1341 = vsel %vm257, %v1330, %v1336
    %v1342 = vsel %vm257, %v1332, %v1338
    %v1343 = vmul.f32 %v220, %v228
    %v1344 = vmul.f32 %v225, %v229
    %v1345 = vmul.f32 %v1341, %v230
    %v1346 = vmul.f32 %v1342, %v231
    %v1347 = vadd.f32 %v1343, %v1345
    %v1348 = vadd.f32 %v1344, %v1346
    %1351 = vrot.lane.b32.xlu0 %v1299, 64
    %v1352 = vpop.permute.xlu0 %1351
    %1353 = vrot.lane.b32.xlu0 %v1300, 64
    %v1354 = vpop.permute.xlu0 %1353
    %v1356 = vsel %vm342, %v1347, 0
    %v1359 = vsel %vm342, %v1348, 0
    %v1361 = vsel %vm342, %v1352, 0
    %v1363 = vsel %vm342, %v1354, 0
    %1365 = vmatprep.subr.mxu0 0.0
    %1366 = vmatpush1.xpose.msra.mxu0 %v1361
    %1367 = vmatprep.subr.mxu0 0.0
    %1368 = vmatpush1.xpose.msra.mxu0 %v1363
    %1369 = vmatprep.subr.mxu0 0.0
    %1370 = vmatpush1.xpose.msra.mxu0 0.0
    %1371 = vmatprep.subr.mxu0 0.0
    %1372 = vmatpush1.xpose.msra.mxu0 0.0
    %1373 = vmatprep.subr.mxu0 0.0
    %1374 = vmatpush1.xpose.msra.mxu0 0.0
    %1375 = vmatprep.subr.mxu0 0.0
    %1376 = vmatpush1.xpose.msra.mxu0 0.0
    %1377 = vmatprep.subr.mxu0 0.0
    %1378 = vmatpush1.xpose.msra.mxu0 0.0
    %1379 = vmatprep.subr.mxu0 0.0
    %1380 = vmatpush1.xpose.msra.mxu0 0.0
    %1381 = vmatprep.subr.mxu0 0.0
    %1382 = vmatpush1.xpose.msra.mxu0 0.0
    %1383 = vmatprep.subr.mxu0 0.0
    %1384 = vmatpush1.xpose.msra.mxu0 0.0
    %1385 = vmatprep.subr.mxu0 0.0
    %1386 = vmatpush1.xpose.msra.mxu0 0.0
    %1387 = vmatprep.subr.mxu0 0.0
    %1388 = vmatpush1.xpose.msra.mxu0 0.0
    %1389 = vmatprep.subr.mxu0 0.0
    %1390 = vmatpush1.xpose.msra.mxu0 0.0
    %1391 = vmatprep.subr.mxu0 0.0
    %1392 = vmatpush1.xpose.msra.mxu0 0.0
    %1393 = vmatprep.subr.mxu0 0.0
    %1394 = vmatpush1.xpose.msra.mxu0 0.0
    %1395 = vmatprep.subr.mxu0 0.0
    %1396 = vmatpush1.xpose.msra.mxu0 0.0
    %1397 = vmatprep.subr.mxu0 0.0
    %1398 = vmatpush1.xpose.msra.mxu0 0.0
    %1399 = vmatprep.subr.mxu0 0.0
    %1400 = vmatpush1.xpose.msra.mxu0 0.0
    %1401 = vmatprep.subr.mxu0 0.0
    %1402 = vmatpush1.xpose.msra.mxu0 0.0
    %1403 = vmatprep.subr.mxu0 0.0
    %1404 = vmatpush1.xpose.msra.mxu0 0.0
    %1405 = vmatprep.subr.mxu0 0.0
    %1406 = vmatpush1.xpose.msra.mxu0 0.0
    %1407 = vmatprep.subr.mxu0 0.0
    %1408 = vmatpush1.xpose.msra.mxu0 0.0
    %1409 = vmatprep.subr.mxu0 0.0
    %1410 = vmatpush1.xpose.msra.mxu0 0.0
    %1411 = vmatprep.subr.mxu0 0.0
    %1412 = vmatpush1.xpose.msra.mxu0 0.0
    %1413 = vmatprep.subr.mxu0 0.0
    %1414 = vmatpush1.xpose.msra.mxu0 0.0
    %1415 = vmatprep.subr.mxu0 0.0
    %1416 = vmatpush1.xpose.msra.mxu0 0.0
    %1417 = vmatprep.subr.mxu0 0.0
    %1418 = vmatpush1.xpose.msra.mxu0 0.0
    %1419 = vmatprep.subr.mxu0 0.0
    %1420 = vmatpush1.xpose.msra.mxu0 0.0
    %1421 = vmatprep.subr.mxu0 0.0
    %1422 = vmatpush1.xpose.msra.mxu0 0.0
    %1423 = vmatprep.subr.mxu0 0.0
    %1424 = vmatpush1.xpose.msra.mxu0 0.0
    %1425 = vmatprep.subr.mxu0 0.0
    %1426 = vmatpush1.xpose.msra.mxu0 0.0
    %1427 = vmatprep.subr.mxu0 0.0
    %1428 = vmatpush1.xpose.msra.mxu0 0.0
    %1429 = vmatprep.mubr.f32.mxu0 0.0
    %1430 = vmatmul.mubr.f32.gmra.mrb[0].mxu0 %v1356
    %v1431 = vpop.f32.mrb[0].mxu0
    %v1432 = vadd.f32 0.0, %v1431
    %v1433 = vpop.f32.mrb[0].mxu0
    %1434 = vmatprep.mubr.f32.mxu0 0.0
    %1435 = vmatmul.mubr.f32.gmra.mrb[0].mxu0 %v1359
    %v1436 = vpop.f32.mrb[0].mxu0
    %v1437 = vadd.f32 0.0, %v1436
    %v1438 = vpop.f32.mrb[0].mxu0
    %1439 = vdwg.mxu0
    %v1440 = vmul.f32 %v1432, 0.25
    %v1441 = vmul.f32 %v1437, 0.25
    %v1442 = vsel %vm237, %v1440, -inf
    %v1443 = vsel %vm238, %v1441, -inf
    %v1444 = vsel %vm342, %v1442, -inf
    %1445 = vmax.xlane.f32.xlu0 %v1444
    %v1446 = vpop.xlane.xlu0 %1445
    %v1447 = vsel %vm342, %v1443, -inf
    %1448 = vmax.xlane.f32.xlu0 %v1447
    %v1449 = vpop.xlane.xlu0 %1448
    %v1450 = vsub.f32 %v1442, %v1446
    %v1451 = vsub.f32 %v1443, %v1449
    %v1452 = vmul.f32 %v1450, 1.442695
    %v1453 = vpow.pop %v1452
    %v1454 = vmul.f32 %v1451, 1.442695
    %v1455 = vpow.pop %v1454
    %v1456 = vsel %vm342, %v1453, 0.0
    %1457 = vadd.xlane.f32.xlu0 %v1456
    %v1458 = vpop.xlane.xlu0 %1457
    %v1459 = vsel %vm342, %v1455, 0.0
    %1460 = vadd.xlane.f32.xlu0 %v1459
    %v1461 = vpop.xlane.xlu0 %1460
    %v1462 = vrcp.pop %v1458
    %v1463 = vrcp.pop %v1461
    %v1464 = vmul.f32 %v1453, %v1462
    %v1465 = vmul.f32 %v1455, %v1463
    %1466 = vrot.lane.b32.xlu0 %v220, 32
    %v1467 = vpop.permute.xlu0 %1466
    %1468 = vrot.lane.b32.xlu0 %v225, 32
    %v1469 = vpop.permute.xlu0 %1468
    %v1473 = vsel %vm342, %v1464, 0
    %v1476 = vsel %vm342, %v1465, 0
    %1478 = vmatprep.subr.mxu0 0.0
    %1479 = vmatpush1.msra.mxu0 %v1467
    %1480 = vmatprep.subr.mxu0 0.0
    %1481 = vmatpush1.msra.mxu0 %v1469
    %1482 = vmatprep.subr.mxu0 0.0
    %1483 = vmatpush1.msra.mxu0 0.0
    %1484 = vmatprep.subr.mxu0 0.0
    %1485 = vmatpush1.msra.mxu0 0.0
    %1486 = vmatprep.subr.mxu0 0.0
    %1487 = vmatpush1.msra.mxu0 0.0
    %1488 = vmatprep.subr.mxu0 0.0
    %1489 = vmatpush1.msra.mxu0 0.0
    %1490 = vmatprep.subr.mxu0 0.0
    %1491 = vmatpush1.msra.mxu0 0.0
    %1492 = vmatprep.subr.mxu0 0.0
    %1493 = vmatpush1.msra.mxu0 0.0
    %1494 = vmatprep.subr.mxu0 0.0
    %1495 = vmatpush1.msra.mxu0 0.0
    %1496 = vmatprep.subr.mxu0 0.0
    %1497 = vmatpush1.msra.mxu0 0.0
    %1498 = vmatprep.subr.mxu0 0.0
    %1499 = vmatpush1.msra.mxu0 0.0
    %1500 = vmatprep.subr.mxu0 0.0
    %1501 = vmatpush1.msra.mxu0 0.0
    %1502 = vmatprep.subr.mxu0 0.0
    %1503 = vmatpush1.msra.mxu0 0.0
    %1504 = vmatprep.subr.mxu0 0.0
    %1505 = vmatpush1.msra.mxu0 0.0
    %1506 = vmatprep.subr.mxu0 0.0
    %1507 = vmatpush1.msra.mxu0 0.0
    %1508 = vmatprep.subr.mxu0 0.0
    %1509 = vmatpush1.msra.mxu0 0.0
    %1510 = vmatprep.subr.mxu0 0.0
    %1511 = vmatpush1.msra.mxu0 0.0
    %1512 = vmatprep.subr.mxu0 0.0
    %1513 = vmatpush1.msra.mxu0 0.0
    %1514 = vmatprep.subr.mxu0 0.0
    %1515 = vmatpush1.msra.mxu0 0.0
    %1516 = vmatprep.subr.mxu0 0.0
    %1517 = vmatpush1.msra.mxu0 0.0
    %1518 = vmatprep.subr.mxu0 0.0
    %1519 = vmatpush1.msra.mxu0 0.0
    %1520 = vmatprep.subr.mxu0 0.0
    %1521 = vmatpush1.msra.mxu0 0.0
    %1522 = vmatprep.subr.mxu0 0.0
    %1523 = vmatpush1.msra.mxu0 0.0
    %1524 = vmatprep.subr.mxu0 0.0
    %1525 = vmatpush1.msra.mxu0 0.0
    %1526 = vmatprep.subr.mxu0 0.0
    %1527 = vmatpush1.msra.mxu0 0.0
    %1528 = vmatprep.subr.mxu0 0.0
    %1529 = vmatpush1.msra.mxu0 0.0
    %1530 = vmatprep.subr.mxu0 0.0
    %1531 = vmatpush1.msra.mxu0 0.0
    %1532 = vmatprep.subr.mxu0 0.0
    %1533 = vmatpush1.msra.mxu0 0.0
    %1534 = vmatprep.subr.mxu0 0.0
    %1535 = vmatpush1.msra.mxu0 0.0
    %1536 = vmatprep.subr.mxu0 0.0
    %1537 = vmatpush1.msra.mxu0 0.0
    %1538 = vmatprep.subr.mxu0 0.0
    %1539 = vmatpush1.msra.mxu0 0.0
    %1540 = vmatprep.subr.mxu0 0.0
    %1541 = vmatpush1.msra.mxu0 0.0
    %1542 = vmatprep.mubr.f32.mxu0 0.0
    %1543 = vmatmul.mubr.f32.gmra.mrb[0].mxu0 %v1473
    %v1544 = vpop.f32.mrb[0].mxu0
    %v1545 = vadd.f32 0.0, %v1544
    %v1546 = vpop.f32.mrb[0].mxu0
    %1547 = vmatprep.mubr.f32.mxu0 0.0
    %1548 = vmatmul.mubr.f32.gmra.mrb[0].mxu0 %v1476
    %v1549 = vpop.f32.mrb[0].mxu0
    %v1550 = vadd.f32 0.0, %v1549
    %v1551 = vpop.f32.mrb[0].mxu0
    %1552 = vdwg.mxu0
    %1553 = vrot.lane.b32.xlu0 %v1267, 104
    %v1554 = vpop.permute.xlu0 %1553
    %1555 = vrot.lane.b32.xlu0 %v1268, 104
    %v1556 = vpop.permute.xlu0 %1555
    %1559 = vrot.lane.b32.xlu0 %v220, 120
    %v1560 = vpop.permute.xlu0 %1559
    %1561 = vrot.lane.b32.xlu0 %v225, 120
    %v1562 = vpop.permute.xlu0 %1561
    %v1565 = vsel %vm257, %v1554, %v1560
    %v1566 = vsel %vm257, %v1556, %v1562
    %v1567 = vmul.f32 %v220, %v556
    %v1568 = vmul.f32 %v225, %v558
    %v1569 = vmul.f32 %v1565, %v230
    %v1570 = vmul.f32 %v1566, %v231
    %1573 = vrot.lane.b32.xlu0 %v1569, 16
    %v1574 = vpop.permute.xlu0 %1573
    %1575 = vrot.lane.b32.xlu0 %v1570, 16
    %v1576 = vpop.permute.xlu0 %1575
    %v1579 = vadd.f32 %v1567, %v1574
    %v1580 = vadd.f32 %v1568, %v1576
    %1583 = vrot.lane.b32.xlu0 %v1579, 112
    %v1584 = vpop.permute.xlu0 %1583
    %1585 = vrot.lane.b32.xlu0 %v1580, 112
    %v1586 = vpop.permute.xlu0 %1585
    %v1587 = vsel %vm342, %v1584, 0
    %v1589 = vsel %vm342, %v1586, 0
    %1591 = vmatprep.subr.mxu0 0.0
    %1592 = vmatpush1.xpose.msra.mxu0 %v1361
    %1593 = vmatprep.subr.mxu0 0.0
    %1594 = vmatpush1.xpose.msra.mxu0 %v1363
    %1595 = vmatprep.subr.mxu0 0.0
    %1596 = vmatpush1.xpose.msra.mxu0 0.0
    %1597 = vmatprep.subr.mxu0 0.0
    %1598 = vmatpush1.xpose.msra.mxu0 0.0
    %1599 = vmatprep.subr.mxu0 0.0
    %1600 = vmatpush1.xpose.msra.mxu0 0.0
    %1601 = vmatprep.subr.mxu0 0.0
    %1602 = vmatpush1.xpose.msra.mxu0 0.0
    %1603 = vmatprep.subr.mxu0 0.0
    %1604 = vmatpush1.xpose.msra.mxu0 0.0
    %1605 = vmatprep.subr.mxu0 0.0
    %1606 = vmatpush1.xpose.msra.mxu0 0.0
    %1607 = vmatprep.subr.mxu0 0.0
    %1608 = vmatpush1.xpose.msra.mxu0 0.0
    %1609 = vmatprep.subr.mxu0 0.0
    %1610 = vmatpush1.xpose.msra.mxu0 0.0
    %1611 = vmatprep.subr.mxu0 0.0
    %1612 = vmatpush1.xpose.msra.mxu0 0.0
    %1613 = vmatprep.subr.mxu0 0.0
    %1614 = vmatpush1.xpose.msra.mxu0 0.0
    %1615 = vmatprep.subr.mxu0 0.0
    %1616 = vmatpush1.xpose.msra.mxu0 0.0
    %1617 = vmatprep.subr.mxu0 0.0
    %1618 = vmatpush1.xpose.msra.mxu0 0.0
    %1619 = vmatprep.subr.mxu0 0.0
    %1620 = vmatpush1.xpose.msra.mxu0 0.0
    %1621 = vmatprep.subr.mxu0 0.0
    %1622 = vmatpush1.xpose.msra.mxu0 0.0
    %1623 = vmatprep.subr.mxu0 0.0
    %1624 = vmatpush1.xpose.msra.mxu0 0.0
    %1625 = vmatprep.subr.mxu0 0.0
    %1626 = vmatpush1.xpose.msra.mxu0 0.0
    %1627 = vmatprep.subr.mxu0 0.0
    %1628 = vmatpush1.xpose.msra.mxu0 0.0
    %1629 = vmatprep.subr.mxu0 0.0
    %1630 = vmatpush1.xpose.msra.mxu0 0.0
    %1631 = vmatprep.subr.mxu0 0.0
    %1632 = vmatpush1.xpose.msra.mxu0 0.0
    %1633 = vmatprep.subr.mxu0 0.0
    %1634 = vmatpush1.xpose.msra.mxu0 0.0
    %1635 = vmatprep.subr.mxu0 0.0
    %1636 = vmatpush1.xpose.msra.mxu0 0.0
    %1637 = vmatprep.subr.mxu0 0.0
    %1638 = vmatpush1.xpose.msra.mxu0 0.0
    %1639 = vmatprep.subr.mxu0 0.0
    %1640 = vmatpush1.xpose.msra.mxu0 0.0
    %1641 = vmatprep.subr.mxu0 0.0
    %1642 = vmatpush1.xpose.msra.mxu0 0.0
    %1643 = vmatprep.subr.mxu0 0.0
    %1644 = vmatpush1.xpose.msra.mxu0 0.0
    %1645 = vmatprep.subr.mxu0 0.0
    %1646 = vmatpush1.xpose.msra.mxu0 0.0
    %1647 = vmatprep.subr.mxu0 0.0
    %1648 = vmatpush1.xpose.msra.mxu0 0.0
    %1649 = vmatprep.subr.mxu0 0.0
    %1650 = vmatpush1.xpose.msra.mxu0 0.0
    %1651 = vmatprep.subr.mxu0 0.0
    %1652 = vmatpush1.xpose.msra.mxu0 0.0
    %1653 = vmatprep.subr.mxu0 0.0
    %1654 = vmatpush1.xpose.msra.mxu0 0.0
    %1655 = vmatprep.mubr.f32.mxu0 0.0
    %1656 = vmatmul.mubr.f32.gmra.mrb[0].mxu0 %v1587
    %v1657 = vpop.f32.mrb[0].mxu0
    %v1658 = vadd.f32 0.0, %v1657
    %v1659 = vpop.f32.mrb[0].mxu0
    %1660 = vmatprep.mubr.f32.mxu0 0.0
    %1661 = vmatmul.mubr.f32.gmra.mrb[0].mxu0 %v1589
    %v1662 = vpop.f32.mrb[0].mxu0
    %v1663 = vadd.f32 0.0, %v1662
    %v1664 = vpop.f32.mrb[0].mxu0
    %1665 = vdwg.mxu0
    %v1666 = vmul.f32 %v1658, 0.25
    %v1667 = vmul.f32 %v1663, 0.25
    %v1668 = vsel %vm237, %v1666, -inf
    %v1669 = vsel %vm238, %v1667, -inf
    %v1670 = vsel %vm342, %v1668, -inf
    %1671 = vmax.xlane.f32.xlu0 %v1670
    %v1672 = vpop.xlane.xlu0 %1671
    %v1673 = vsel %vm342, %v1669, -inf
    %1674 = vmax.xlane.f32.xlu0 %v1673
    %v1675 = vpop.xlane.xlu0 %1674
    %v1676 = vsub.f32 %v1668, %v1672
    %v1677 = vsub.f32 %v1669, %v1675
    %v1678 = vmul.f32 %v1676, 1.442695
    %v1679 = vpow.pop %v1678
    %v1680 = vmul.f32 %v1677, 1.442695
    %v1681 = vpow.pop %v1680
    %v1682 = vsel %vm342, %v1679, 0.0
    %1683 = vadd.xlane.f32.xlu0 %v1682
    %v1684 = vpop.xlane.xlu0 %1683
    %v1685 = vsel %vm342, %v1681, 0.0
    %1686 = vadd.xlane.f32.xlu0 %v1685
    %v1687 = vpop.xlane.xlu0 %1686
    %v1688 = vrcp.pop %v1684
    %v1689 = vrcp.pop %v1687
    %v1690 = vmul.f32 %v1679, %v1688
    %v1691 = vmul.f32 %v1681, %v1689
    %v1693 = vsel %vm342, %v1690, 0
    %v1696 = vsel %vm342, %v1691, 0
    %1698 = vmatprep.subr.mxu0 0.0
    %1699 = vmatpush1.msra.mxu0 %v1467
    %1700 = vmatprep.subr.mxu0 0.0
    %1701 = vmatpush1.msra.mxu0 %v1469
    %1702 = vmatprep.subr.mxu0 0.0
    %1703 = vmatpush1.msra.mxu0 0.0
    %1704 = vmatprep.subr.mxu0 0.0
    %1705 = vmatpush1.msra.mxu0 0.0
    %1706 = vmatprep.subr.mxu0 0.0
    %1707 = vmatpush1.msra.mxu0 0.0
    %1708 = vmatprep.subr.mxu0 0.0
    %1709 = vmatpush1.msra.mxu0 0.0
    %1710 = vmatprep.subr.mxu0 0.0
    %1711 = vmatpush1.msra.mxu0 0.0
    %1712 = vmatprep.subr.mxu0 0.0
    %1713 = vmatpush1.msra.mxu0 0.0
    %1714 = vmatprep.subr.mxu0 0.0
    %1715 = vmatpush1.msra.mxu0 0.0
    %1716 = vmatprep.subr.mxu0 0.0
    %1717 = vmatpush1.msra.mxu0 0.0
    %1718 = vmatprep.subr.mxu0 0.0
    %1719 = vmatpush1.msra.mxu0 0.0
    %1720 = vmatprep.subr.mxu0 0.0
    %1721 = vmatpush1.msra.mxu0 0.0
    %1722 = vmatprep.subr.mxu0 0.0
    %1723 = vmatpush1.msra.mxu0 0.0
    %1724 = vmatprep.subr.mxu0 0.0
    %1725 = vmatpush1.msra.mxu0 0.0
    %1726 = vmatprep.subr.mxu0 0.0
    %1727 = vmatpush1.msra.mxu0 0.0
    %1728 = vmatprep.subr.mxu0 0.0
    %1729 = vmatpush1.msra.mxu0 0.0
    %1730 = vmatprep.subr.mxu0 0.0
    %1731 = vmatpush1.msra.mxu0 0.0
    %1732 = vmatprep.subr.mxu0 0.0
    %1733 = vmatpush1.msra.mxu0 0.0
    %1734 = vmatprep.subr.mxu0 0.0
    %1735 = vmatpush1.msra.mxu0 0.0
    %1736 = vmatprep.subr.mxu0 0.0
    %1737 = vmatpush1.msra.mxu0 0.0
    %1738 = vmatprep.subr.mxu0 0.0
    %1739 = vmatpush1.msra.mxu0 0.0
    %1740 = vmatprep.subr.mxu0 0.0
    %1741 = vmatpush1.msra.mxu0 0.0
    %1742 = vmatprep.subr.mxu0 0.0
    %1743 = vmatpush1.msra.mxu0 0.0
    %1744 = vmatprep.subr.mxu0 0.0
    %1745 = vmatpush1.msra.mxu0 0.0
    %1746 = vmatprep.subr.mxu0 0.0
    %1747 = vmatpush1.msra.mxu0 0.0
    %1748 = vmatprep.subr.mxu0 0.0
    %1749 = vmatpush1.msra.mxu0 0.0
    %1750 = vmatprep.subr.mxu0 0.0
    %1751 = vmatpush1.msra.mxu0 0.0
    %1752 = vmatprep.subr.mxu0 0.0
    %1753 = vmatpush1.msra.mxu0 0.0
    %1754 = vmatprep.subr.mxu0 0.0
    %1755 = vmatpush1.msra.mxu0 0.0
    %1756 = vmatprep.subr.mxu0 0.0
    %1757 = vmatpush1.msra.mxu0 0.0
    %1758 = vmatprep.subr.mxu0 0.0
    %1759 = vmatpush1.msra.mxu0 0.0
    %1760 = vmatprep.subr.mxu0 0.0
    %1761 = vmatpush1.msra.mxu0 0.0
    %1762 = vmatprep.mubr.f32.mxu0 0.0
    %1763 = vmatmul.mubr.f32.gmra.mrb[0].mxu0 %v1693
    %v1764 = vpop.f32.mrb[0].mxu0
    %v1765 = vadd.f32 0.0, %v1764
    %v1766 = vpop.f32.mrb[0].mxu0
    %1767 = vmatprep.mubr.f32.mxu0 0.0
    %1768 = vmatmul.mubr.f32.gmra.mrb[0].mxu0 %v1696
    %v1769 = vpop.f32.mrb[0].mxu0
    %v1770 = vadd.f32 0.0, %v1769
    %v1771 = vpop.f32.mrb[0].mxu0
    %1772 = vdwg.mxu0
    %1773 = vrot.lane.b32.xlu0 %v1267, 88
    %v1774 = vpop.permute.xlu0 %1773
    %1775 = vrot.lane.b32.xlu0 %v1268, 88
    %v1776 = vpop.permute.xlu0 %1775
    %1779 = vrot.lane.b32.xlu0 %v220, 104
    %v1780 = vpop.permute.xlu0 %1779
    %1781 = vrot.lane.b32.xlu0 %v225, 104
    %v1782 = vpop.permute.xlu0 %1781
    %v1785 = vsel %vm257, %v1774, %v1780
    %v1786 = vsel %vm257, %v1776, %v1782
    %v1787 = vmul.f32 %v220, %v782
    %v1788 = vmul.f32 %v225, %v784
    %v1789 = vmul.f32 %v1785, %v230
    %v1790 = vmul.f32 %v1786, %v231
    %1793 = vrot.lane.b32.xlu0 %v1789, 32
    %v1794 = vpop.permute.xlu0 %1793
    %1795 = vrot.lane.b32.xlu0 %v1790, 32
    %v1796 = vpop.permute.xlu0 %1795
    %v1799 = vadd.f32 %v1787, %v1794
    %v1800 = vadd.f32 %v1788, %v1796
    %1803 = vrot.lane.b32.xlu0 %v1799, 96
    %v1804 = vpop.permute.xlu0 %1803
    %1805 = vrot.lane.b32.xlu0 %v1800, 96
    %v1806 = vpop.permute.xlu0 %1805
    %1809 = vrot.lane.b32.xlu0 %v1327, 48
    %v1810 = vpop.permute.xlu0 %1809
    %1811 = vrot.lane.b32.xlu0 %v1328, 48
    %v1812 = vpop.permute.xlu0 %1811
    %v1813 = vsel %vm342, %v1804, 0
    %v1815 = vsel %vm342, %v1806, 0
    %v1817 = vsel %vm342, %v1810, 0
    %v1819 = vsel %vm342, %v1812, 0
    %1821 = vmatprep.subr.mxu0 0.0
    %1822 = vmatpush1.xpose.msra.mxu0 %v1817
    %1823 = vmatprep.subr.mxu0 0.0
    %1824 = vmatpush1.xpose.msra.mxu0 %v1819
    %1825 = vmatprep.subr.mxu0 0.0
    %1826 = vmatpush1.xpose.msra.mxu0 0.0
    %1827 = vmatprep.subr.mxu0 0.0
    %1828 = vmatpush1.xpose.msra.mxu0 0.0
    %1829 = vmatprep.subr.mxu0 0.0
    %1830 = vmatpush1.xpose.msra.mxu0 0.0
    %1831 = vmatprep.subr.mxu0 0.0
    %1832 = vmatpush1.xpose.msra.mxu0 0.0
    %1833 = vmatprep.subr.mxu0 0.0
    %1834 = vmatpush1.xpose.msra.mxu0 0.0
    %1835 = vmatprep.subr.mxu0 0.0
    %1836 = vmatpush1.xpose.msra.mxu0 0.0
    %1837 = vmatprep.subr.mxu0 0.0
    %1838 = vmatpush1.xpose.msra.mxu0 0.0
    %1839 = vmatprep.subr.mxu0 0.0
    %1840 = vmatpush1.xpose.msra.mxu0 0.0
    %1841 = vmatprep.subr.mxu0 0.0
    %1842 = vmatpush1.xpose.msra.mxu0 0.0
    %1843 = vmatprep.subr.mxu0 0.0
    %1844 = vmatpush1.xpose.msra.mxu0 0.0
    %1845 = vmatprep.subr.mxu0 0.0
    %1846 = vmatpush1.xpose.msra.mxu0 0.0
    %1847 = vmatprep.subr.mxu0 0.0
    %1848 = vmatpush1.xpose.msra.mxu0 0.0
    %1849 = vmatprep.subr.mxu0 0.0
    %1850 = vmatpush1.xpose.msra.mxu0 0.0
    %1851 = vmatprep.subr.mxu0 0.0
    %1852 = vmatpush1.xpose.msra.mxu0 0.0
    %1853 = vmatprep.subr.mxu0 0.0
    %1854 = vmatpush1.xpose.msra.mxu0 0.0
    %1855 = vmatprep.subr.mxu0 0.0
    %1856 = vmatpush1.xpose.msra.mxu0 0.0
    %1857 = vmatprep.subr.mxu0 0.0
    %1858 = vmatpush1.xpose.msra.mxu0 0.0
    %1859 = vmatprep.subr.mxu0 0.0
    %1860 = vmatpush1.xpose.msra.mxu0 0.0
    %1861 = vmatprep.subr.mxu0 0.0
    %1862 = vmatpush1.xpose.msra.mxu0 0.0
    %1863 = vmatprep.subr.mxu0 0.0
    %1864 = vmatpush1.xpose.msra.mxu0 0.0
    %1865 = vmatprep.subr.mxu0 0.0
    %1866 = vmatpush1.xpose.msra.mxu0 0.0
    %1867 = vmatprep.subr.mxu0 0.0
    %1868 = vmatpush1.xpose.msra.mxu0 0.0
    %1869 = vmatprep.subr.mxu0 0.0
    %1870 = vmatpush1.xpose.msra.mxu0 0.0
    %1871 = vmatprep.subr.mxu0 0.0
    %1872 = vmatpush1.xpose.msra.mxu0 0.0
    %1873 = vmatprep.subr.mxu0 0.0
    %1874 = vmatpush1.xpose.msra.mxu0 0.0
    %1875 = vmatprep.subr.mxu0 0.0
    %1876 = vmatpush1.xpose.msra.mxu0 0.0
    %1877 = vmatprep.subr.mxu0 0.0
    %1878 = vmatpush1.xpose.msra.mxu0 0.0
    %1879 = vmatprep.subr.mxu0 0.0
    %1880 = vmatpush1.xpose.msra.mxu0 0.0
    %1881 = vmatprep.subr.mxu0 0.0
    %1882 = vmatpush1.xpose.msra.mxu0 0.0
    %1883 = vmatprep.subr.mxu0 0.0
    %1884 = vmatpush1.xpose.msra.mxu0 0.0
    %1885 = vmatprep.mubr.f32.mxu0 0.0
    %1886 = vmatmul.mubr.f32.gmra.mrb[0].mxu0 %v1813
    %v1887 = vpop.f32.mrb[0].mxu0
    %v1888 = vadd.f32 0.0, %v1887
    %v1889 = vpop.f32.mrb[0].mxu0
    %1890 = vmatprep.mubr.f32.mxu0 0.0
    %1891 = vmatmul.mubr.f32.gmra.mrb[0].mxu0 %v1815
    %v1892 = vpop.f32.mrb[0].mxu0
    %v1893 = vadd.f32 0.0, %v1892
    %v1894 = vpop.f32.mrb[0].mxu0
    %1895 = vdwg.mxu0
    %v1896 = vmul.f32 %v1888, 0.25
    %v1897 = vmul.f32 %v1893, 0.25
    %v1898 = vsel %vm237, %v1896, -inf
    %v1899 = vsel %vm238, %v1897, -inf
    %v1900 = vsel %vm342, %v1898, -inf
    %1901 = vmax.xlane.f32.xlu0 %v1900
    %v1902 = vpop.xlane.xlu0 %1901
    %v1903 = vsel %vm342, %v1899, -inf
    %1904 = vmax.xlane.f32.xlu0 %v1903
    %v1905 = vpop.xlane.xlu0 %1904
    %v1906 = vsub.f32 %v1898, %v1902
    %v1907 = vsub.f32 %v1899, %v1905
    %v1908 = vmul.f32 %v1906, 1.442695
    %v1909 = vpow.pop %v1908
    %v1910 = vmul.f32 %v1907, 1.442695
    %v1911 = vpow.pop %v1910
    %v1912 = vsel %vm342, %v1909, 0.0
    %1913 = vadd.xlane.f32.xlu0 %v1912
    %v1914 = vpop.xlane.xlu0 %1913
    %v1915 = vsel %vm342, %v1911, 0.0
    %1916 = vadd.xlane.f32.xlu0 %v1915
    %v1917 = vpop.xlane.xlu0 %1916
    %v1918 = vrcp.pop %v1914
    %v1919 = vrcp.pop %v1917
    %v1920 = vmul.f32 %v1909, %v1918
    %v1921 = vmul.f32 %v1911, %v1919
    %1922 = vrot.lane.b32.xlu0 %v220, 16
    %v1923 = vpop.permute.xlu0 %1922
    %1924 = vrot.lane.b32.xlu0 %v225, 16
    %v1925 = vpop.permute.xlu0 %1924
    %v1929 = vsel %vm342, %v1920, 0
    %v1932 = vsel %vm342, %v1921, 0
    %1934 = vmatprep.subr.mxu0 0.0
    %1935 = vmatpush1.msra.mxu0 %v1923
    %1936 = vmatprep.subr.mxu0 0.0
    %1937 = vmatpush1.msra.mxu0 %v1925
    %1938 = vmatprep.subr.mxu0 0.0
    %1939 = vmatpush1.msra.mxu0 0.0
    %1940 = vmatprep.subr.mxu0 0.0
    %1941 = vmatpush1.msra.mxu0 0.0
    %1942 = vmatprep.subr.mxu0 0.0
    %1943 = vmatpush1.msra.mxu0 0.0
    %1944 = vmatprep.subr.mxu0 0.0
    %1945 = vmatpush1.msra.mxu0 0.0
    %1946 = vmatprep.subr.mxu0 0.0
    %1947 = vmatpush1.msra.mxu0 0.0
    %1948 = vmatprep.subr.mxu0 0.0
    %1949 = vmatpush1.msra.mxu0 0.0
    %1950 = vmatprep.subr.mxu0 0.0
    %1951 = vmatpush1.msra.mxu0 0.0
    %1952 = vmatprep.subr.mxu0 0.0
    %1953 = vmatpush1.msra.mxu0 0.0
    %1954 = vmatprep.subr.mxu0 0.0
    %1955 = vmatpush1.msra.mxu0 0.0
    %1956 = vmatprep.subr.mxu0 0.0
    %1957 = vmatpush1.msra.mxu0 0.0
    %1958 = vmatprep.subr.mxu0 0.0
    %1959 = vmatpush1.msra.mxu0 0.0
    %1960 = vmatprep.subr.mxu0 0.0
    %1961 = vmatpush1.msra.mxu0 0.0
    %1962 = vmatprep.subr.mxu0 0.0
    %1963 = vmatpush1.msra.mxu0 0.0
    %1964 = vmatprep.subr.mxu0 0.0
    %1965 = vmatpush1.msra.mxu0 0.0
    %1966 = vmatprep.subr.mxu0 0.0
    %1967 = vmatpush1.msra.mxu0 0.0
    %1968 = vmatprep.subr.mxu0 0.0
    %1969 = vmatpush1.msra.mxu0 0.0
    %1970 = vmatprep.subr.mxu0 0.0
    %1971 = vmatpush1.msra.mxu0 0.0
    %1972 = vmatprep.subr.mxu0 0.0
    %1973 = vmatpush1.msra.mxu0 0.0
    %1974 = vmatprep.subr.mxu0 0.0
    %1975 = vmatpush1.msra.mxu0 0.0
    %1976 = vmatprep.subr.mxu0 0.0
    %1977 = vmatpush1.msra.mxu0 0.0
    %1978 = vmatprep.subr.mxu0 0.0
    %1979 = vmatpush1.msra.mxu0 0.0
    %1980 = vmatprep.subr.mxu0 0.0
    %1981 = vmatpush1.msra.mxu0 0.0
    %1982 = vmatprep.subr.mxu0 0.0
    %1983 = vmatpush1.msra.mxu0 0.0
    %1984 = vmatprep.subr.mxu0 0.0
    %1985 = vmatpush1.msra.mxu0 0.0
    %1986 = vmatprep.subr.mxu0 0.0
    %1987 = vmatpush1.msra.mxu0 0.0
    %1988 = vmatprep.subr.mxu0 0.0
    %1989 = vmatpush1.msra.mxu0 0.0
    %1990 = vmatprep.subr.mxu0 0.0
    %1991 = vmatpush1.msra.mxu0 0.0
    %1992 = vmatprep.subr.mxu0 0.0
    %1993 = vmatpush1.msra.mxu0 0.0
    %1994 = vmatprep.subr.mxu0 0.0
    %1995 = vmatpush1.msra.mxu0 0.0
    %1996 = vmatprep.subr.mxu0 0.0
    %1997 = vmatpush1.msra.mxu0 0.0
    %1998 = vmatprep.mubr.f32.mxu0 0.0
    %1999 = vmatmul.mubr.f32.gmra.mrb[0].mxu0 %v1929
    %v2000 = vpop.f32.mrb[0].mxu0
    %v2001 = vadd.f32 0.0, %v2000
    %v2002 = vpop.f32.mrb[0].mxu0
    %2003 = vmatprep.mubr.f32.mxu0 0.0
    %2004 = vmatmul.mubr.f32.gmra.mrb[0].mxu0 %v1932
    %v2005 = vpop.f32.mrb[0].mxu0
    %v2006 = vadd.f32 0.0, %v2005
    %v2007 = vpop.f32.mrb[0].mxu0
    %2008 = vdwg.mxu0
    %2009 = vrot.lane.b32.xlu0 %v1267, 72
    %v2010 = vpop.permute.xlu0 %2009
    %2011 = vrot.lane.b32.xlu0 %v1268, 72
    %v2012 = vpop.permute.xlu0 %2011
    %2015 = vrot.lane.b32.xlu0 %v220, 88
    %v2016 = vpop.permute.xlu0 %2015
    %2017 = vrot.lane.b32.xlu0 %v225, 88
    %v2018 = vpop.permute.xlu0 %2017
    %v2021 = vsel %vm257, %v2010, %v2016
    %v2022 = vsel %vm257, %v2012, %v2018
    %v2023 = vmul.f32 %v220, %v1024
    %v2024 = vmul.f32 %v225, %v1026
    %v2025 = vmul.f32 %v2021, %v230
    %v2026 = vmul.f32 %v2022, %v231
    %2029 = vrot.lane.b32.xlu0 %v2025, 48
    %v2030 = vpop.permute.xlu0 %2029
    %2031 = vrot.lane.b32.xlu0 %v2026, 48
    %v2032 = vpop.permute.xlu0 %2031
    %v2035 = vadd.f32 %v2023, %v2030
    %v2036 = vadd.f32 %v2024, %v2032
    %2039 = vrot.lane.b32.xlu0 %v2035, 80
    %v2040 = vpop.permute.xlu0 %2039
    %2041 = vrot.lane.b32.xlu0 %v2036, 80
    %v2042 = vpop.permute.xlu0 %2041
    %v2043 = vsel %vm342, %v2040, 0
    %v2045 = vsel %vm342, %v2042, 0
    %2047 = vmatprep.subr.mxu0 0.0
    %2048 = vmatpush1.xpose.msra.mxu0 %v1817
    %2049 = vmatprep.subr.mxu0 0.0
    %2050 = vmatpush1.xpose.msra.mxu0 %v1819
    %2051 = vmatprep.subr.mxu0 0.0
    %2052 = vmatpush1.xpose.msra.mxu0 0.0
    %2053 = vmatprep.subr.mxu0 0.0
    %2054 = vmatpush1.xpose.msra.mxu0 0.0
    %2055 = vmatprep.subr.mxu0 0.0
    %2056 = vmatpush1.xpose.msra.mxu0 0.0
    %2057 = vmatprep.subr.mxu0 0.0
    %2058 = vmatpush1.xpose.msra.mxu0 0.0
    %2059 = vmatprep.subr.mxu0 0.0
    %2060 = vmatpush1.xpose.msra.mxu0 0.0
    %2061 = vmatprep.subr.mxu0 0.0
    %2062 = vmatpush1.xpose.msra.mxu0 0.0
    %2063 = vmatprep.subr.mxu0 0.0
    %2064 = vmatpush1.xpose.msra.mxu0 0.0
    %2065 = vmatprep.subr.mxu0 0.0
    %2066 = vmatpush1.xpose.msra.mxu0 0.0
    %2067 = vmatprep.subr.mxu0 0.0
    %2068 = vmatpush1.xpose.msra.mxu0 0.0
    %2069 = vmatprep.subr.mxu0 0.0
    %2070 = vmatpush1.xpose.msra.mxu0 0.0
    %2071 = vmatprep.subr.mxu0 0.0
    %2072 = vmatpush1.xpose.msra.mxu0 0.0
    %2073 = vmatprep.subr.mxu0 0.0
    %2074 = vmatpush1.xpose.msra.mxu0 0.0
    %2075 = vmatprep.subr.mxu0 0.0
    %2076 = vmatpush1.xpose.msra.mxu0 0.0
    %2077 = vmatprep.subr.mxu0 0.0
    %2078 = vmatpush1.xpose.msra.mxu0 0.0
    %2079 = vmatprep.subr.mxu0 0.0
    %2080 = vmatpush1.xpose.msra.mxu0 0.0
    %2081 = vmatprep.subr.mxu0 0.0
    %2082 = vmatpush1.xpose.msra.mxu0 0.0
    %2083 = vmatprep.subr.mxu0 0.0
    %2084 = vmatpush1.xpose.msra.mxu0 0.0
    %2085 = vmatprep.subr.mxu0 0.0
    %2086 = vmatpush1.xpose.msra.mxu0 0.0
    %2087 = vmatprep.subr.mxu0 0.0
    %2088 = vmatpush1.xpose.msra.mxu0 0.0
    %2089 = vmatprep.subr.mxu0 0.0
    %2090 = vmatpush1.xpose.msra.mxu0 0.0
    %2091 = vmatprep.subr.mxu0 0.0
    %2092 = vmatpush1.xpose.msra.mxu0 0.0
    %2093 = vmatprep.subr.mxu0 0.0
    %2094 = vmatpush1.xpose.msra.mxu0 0.0
    %2095 = vmatprep.subr.mxu0 0.0
    %2096 = vmatpush1.xpose.msra.mxu0 0.0
    %2097 = vmatprep.subr.mxu0 0.0
    %2098 = vmatpush1.xpose.msra.mxu0 0.0
    %2099 = vmatprep.subr.mxu0 0.0
    %2100 = vmatpush1.xpose.msra.mxu0 0.0
    %2101 = vmatprep.subr.mxu0 0.0
    %2102 = vmatpush1.xpose.msra.mxu0 0.0
    %2103 = vmatprep.subr.mxu0 0.0
    %2104 = vmatpush1.xpose.msra.mxu0 0.0
    %2105 = vmatprep.subr.mxu0 0.0
    %2106 = vmatpush1.xpose.msra.mxu0 0.0
    %2107 = vmatprep.subr.mxu0 0.0
    %2108 = vmatpush1.xpose.msra.mxu0 0.0
    %2109 = vmatprep.subr.mxu0 0.0
    %2110 = vmatpush1.xpose.msra.mxu0 0.0
    %2111 = vmatprep.mubr.f32.mxu0 0.0
    %2112 = vmatmul.mubr.f32.gmra.mrb[0].mxu0 %v2043
    %v2113 = vpop.f32.mrb[0].mxu0
    %v2114 = vadd.f32 0.0, %v2113
    %v2115 = vpop.f32.mrb[0].mxu0
    %2116 = vmatprep.mubr.f32.mxu0 0.0
    %2117 = vmatmul.mubr.f32.gmra.mrb[0].mxu0 %v2045
    %v2118 = vpop.f32.mrb[0].mxu0
    %v2119 = vadd.f32 0.0, %v2118
    %v2120 = vpop.f32.mrb[0].mxu0
    %2121 = vdwg.mxu0
    %v2122 = vmul.f32 %v2114, 0.25
    %v2123 = vmul.f32 %v2119, 0.25
    %v2124 = vsel %vm237, %v2122, -inf
    %v2125 = vsel %vm238, %v2123, -inf
    %v2126 = vsel %vm342, %v2124, -inf
    %2127 = vmax.xlane.f32.xlu0 %v2126
    %v2128 = vpop.xlane.xlu0 %2127
    %v2129 = vsel %vm342, %v2125, -inf
    %2130 = vmax.xlane.f32.xlu0 %v2129
    %v2131 = vpop.xlane.xlu0 %2130
    %v2132 = vsub.f32 %v2124, %v2128
    %v2133 = vsub.f32 %v2125, %v2131
    %v2134 = vmul.f32 %v2132, 1.442695
    %v2135 = vpow.pop %v2134
    %v2136 = vmul.f32 %v2133, 1.442695
    %v2137 = vpow.pop %v2136
    %v2138 = vsel %vm342, %v2135, 0.0
    %2139 = vadd.xlane.f32.xlu0 %v2138
    %v2140 = vpop.xlane.xlu0 %2139
    %v2141 = vsel %vm342, %v2137, 0.0
    %2142 = vadd.xlane.f32.xlu0 %v2141
    %v2143 = vpop.xlane.xlu0 %2142
    %v2144 = vrcp.pop %v2140
    %v2145 = vrcp.pop %v2143
    %v2146 = vmul.f32 %v2135, %v2144
    %v2147 = vmul.f32 %v2137, %v2145
    %v2149 = vsel %vm342, %v2146, 0
    %v2152 = vsel %vm342, %v2147, 0
    %2154 = vmatprep.subr.mxu0 0.0
    %2155 = vmatpush1.msra.mxu0 %v1923
    %2156 = vmatprep.subr.mxu0 0.0
    %2157 = vmatpush1.msra.mxu0 %v1925
    %2158 = vmatprep.subr.mxu0 0.0
    %2159 = vmatpush1.msra.mxu0 0.0
    %2160 = vmatprep.subr.mxu0 0.0
    %2161 = vmatpush1.msra.mxu0 0.0
    %2162 = vmatprep.subr.mxu0 0.0
    %2163 = vmatpush1.msra.mxu0 0.0
    %2164 = vmatprep.subr.mxu0 0.0
    %2165 = vmatpush1.msra.mxu0 0.0
    %2166 = vmatprep.subr.mxu0 0.0
    %2167 = vmatpush1.msra.mxu0 0.0
    %2168 = vmatprep.subr.mxu0 0.0
    %2169 = vmatpush1.msra.mxu0 0.0
    %2170 = vmatprep.subr.mxu0 0.0
    %2171 = vmatpush1.msra.mxu0 0.0
    %2172 = vmatprep.subr.mxu0 0.0
    %2173 = vmatpush1.msra.mxu0 0.0
    %2174 = vmatprep.subr.mxu0 0.0
    %2175 = vmatpush1.msra.mxu0 0.0
    %2176 = vmatprep.subr.mxu0 0.0
    %2177 = vmatpush1.msra.mxu0 0.0
    %2178 = vmatprep.subr.mxu0 0.0
    %2179 = vmatpush1.msra.mxu0 0.0
    %2180 = vmatprep.subr.mxu0 0.0
    %2181 = vmatpush1.msra.mxu0 0.0
    %2182 = vmatprep.subr.mxu0 0.0
    %2183 = vmatpush1.msra.mxu0 0.0
    %2184 = vmatprep.subr.mxu0 0.0
    %2185 = vmatpush1.msra.mxu0 0.0
    %2186 = vmatprep.subr.mxu0 0.0
    %2187 = vmatpush1.msra.mxu0 0.0
    %2188 = vmatprep.subr.mxu0 0.0
    %2189 = vmatpush1.msra.mxu0 0.0
    %2190 = vmatprep.subr.mxu0 0.0
    %2191 = vmatpush1.msra.mxu0 0.0
    %2192 = vmatprep.subr.mxu0 0.0
    %2193 = vmatpush1.msra.mxu0 0.0
    %2194 = vmatprep.subr.mxu0 0.0
    %2195 = vmatpush1.msra.mxu0 0.0
    %2196 = vmatprep.subr.mxu0 0.0
    %2197 = vmatpush1.msra.mxu0 0.0
    %2198 = vmatprep.subr.mxu0 0.0
    %2199 = vmatpush1.msra.mxu0 0.0
    %2200 = vmatprep.subr.mxu0 0.0
    %2201 = vmatpush1.msra.mxu0 0.0
    %2202 = vmatprep.subr.mxu0 0.0
    %2203 = vmatpush1.msra.mxu0 0.0
    %2204 = vmatprep.subr.mxu0 0.0
    %2205 = vmatpush1.msra.mxu0 0.0
    %2206 = vmatprep.subr.mxu0 0.0
    %2207 = vmatpush1.msra.mxu0 0.0
    %2208 = vmatprep.subr.mxu0 0.0
    %2209 = vmatpush1.msra.mxu0 0.0
    %2210 = vmatprep.subr.mxu0 0.0
    %2211 = vmatpush1.msra.mxu0 0.0
    %2212 = vmatprep.subr.mxu0 0.0
    %2213 = vmatpush1.msra.mxu0 0.0
    %2214 = vmatprep.subr.mxu0 0.0
    %2215 = vmatpush1.msra.mxu0 0.0
    %2216 = vmatprep.subr.mxu0 0.0
    %2217 = vmatpush1.msra.mxu0 0.0
    %2218 = vmatprep.mubr.f32.mxu0 0.0
    %2219 = vmatmul.mubr.f32.gmra.mrb[0].mxu0 %v2149
    %v2220 = vpop.f32.mrb[0].mxu0
    %v2221 = vadd.f32 0.0, %v2220
    %v2222 = vpop.f32.mrb[0].mxu0
    %2223 = vmatprep.mubr.f32.mxu0 0.0
    %2224 = vmatmul.mubr.f32.gmra.mrb[0].mxu0 %v2152
    %v2225 = vpop.f32.mrb[0].mxu0
    %v2226 = vadd.f32 0.0, %v2225
    %v2227 = vpop.f32.mrb[0].mxu0
    %2228 = vdwg.mxu0
    %2231 = vrot.lane.b32.xlu0 %v1765, 16
    %v2232 = vpop.permute.xlu0 %2231
    %2233 = vrot.lane.b32.xlu0 %v1770, 16
    %v2234 = vpop.permute.xlu0 %2233
    %2239 = vrot.lane.b32.xlu0 %v2001, 32
    %v2240 = vpop.permute.xlu0 %2239
    %2241 = vrot.lane.b32.xlu0 %v2006, 32
    %v2242 = vpop.permute.xlu0 %2241
    %2247 = vrot.lane.b32.xlu0 %v2221, 48
    %v2248 = vpop.permute.xlu0 %2247
    %2249 = vrot.lane.b32.xlu0 %v2226, 48
    %v2250 = vpop.permute.xlu0 %2249
    %v2253 = vsel %vm342, %v1545, %v2232
    %v2254 = vsel %vm342, %v1550, %v2234
    %v2255 = vsel %vm1261, %v2253, %v2240
    %v2256 = vsel %vm1261, %v2254, %v2242
    %v2257 = vsel %vm1264, %v2255, %v2248
    %v2258 = vsel %vm1264, %v2256, %v2250
    %v2259 = vld [vmem:[#allocation5] sm:$0xff]
    %v2260 = vld [vmem:[#allocation5 + $0x8] sm:$0xff]
    %v2261 = vld [vmem:[#allocation5 + $0x10] sm:$0xff]
    %v2262 = vld [vmem:[#allocation5 + $0x18] sm:$0xff]
    %v2263 = vld [vmem:[#allocation5 + $0x20] sm:$0xff]
    %v2264 = vld [vmem:[#allocation5 + $0x28] sm:$0xff]
    %v2265 = vld [vmem:[#allocation5 + $0x30] sm:$0xff]
    %v2266 = vld [vmem:[#allocation5 + $0x38] sm:$0xff]
    %v2268 = vsel %vm82, %v1265, 0
    %v2271 = vsel %vm82, %v1266, 0
    %v2274 = vsel %vm82, %v2257, 0
    %v2277 = vsel %vm82, %v2258, 0
    %2279 = vmatprep.subr.mxu0 0.0
    %2280 = vmatpush1.msra.mxu0 %v2259
    %2281 = vmatprep.subr.mxu0 0.0
    %2282 = vmatpush1.msra.mxu0 %v2260
    %2283 = vmatprep.subr.mxu0 0.0
    %2284 = vmatpush1.msra.mxu0 %v2261
    %2285 = vmatprep.subr.mxu0 0.0
    %2286 = vmatpush1.msra.mxu0 %v2262
    %2287 = vmatprep.subr.mxu0 0.0
    %2288 = vmatpush1.msra.mxu0 %v2263
    %2289 = vmatprep.subr.mxu0 0.0
    %2290 = vmatpush1.msra.mxu0 %v2264
    %2291 = vmatprep.subr.mxu0 0.0
    %2292 = vmatpush1.msra.mxu0 %v2265
    %2293 = vmatprep.subr.mxu0 0.0
    %2294 = vmatpush1.msra.mxu0 %v2266
    %2295 = vmatprep.subr.mxu0 0.0
    %2296 = vmatpush1.msra.mxu0 0.0
    %2297 = vmatprep.subr.mxu0 0.0
    %2298 = vmatpush1.msra.mxu0 0.0
    %2299 = vmatprep.subr.mxu0 0.0
    %2300 = vmatpush1.msra.mxu0 0.0
    %2301 = vmatprep.subr.mxu0 0.0
    %2302 = vmatpush1.msra.mxu0 0.0
    %2303 = vmatprep.subr.mxu0 0.0
    %2304 = vmatpush1.msra.mxu0 0.0
    %2305 = vmatprep.subr.mxu0 0.0
    %2306 = vmatpush1.msra.mxu0 0.0
    %2307 = vmatprep.subr.mxu0 0.0
    %2308 = vmatpush1.msra.mxu0 0.0
    %2309 = vmatprep.subr.mxu0 0.0
    %2310 = vmatpush1.msra.mxu0 0.0
    %2311 = vmatprep.subr.mxu0 0.0
    %2312 = vmatpush1.msra.mxu0 0.0
    %2313 = vmatprep.subr.mxu0 0.0
    %2314 = vmatpush1.msra.mxu0 0.0
    %2315 = vmatprep.subr.mxu0 0.0
    %2316 = vmatpush1.msra.mxu0 0.0
    %2317 = vmatprep.subr.mxu0 0.0
    %2318 = vmatpush1.msra.mxu0 0.0
    %2319 = vmatprep.subr.mxu0 0.0
    %2320 = vmatpush1.msra.mxu0 0.0
    %2321 = vmatprep.subr.mxu0 0.0
    %2322 = vmatpush1.msra.mxu0 0.0
    %2323 = vmatprep.subr.mxu0 0.0
    %2324 = vmatpush1.msra.mxu0 0.0
    %2325 = vmatprep.subr.mxu0 0.0
    %2326 = vmatpush1.msra.mxu0 0.0
    %2327 = vmatprep.subr.mxu0 0.0
    %2328 = vmatpush1.msra.mxu0 0.0
    %2329 = vmatprep.subr.mxu0 0.0
    %2330 = vmatpush1.msra.mxu0 0.0
    %2331 = vmatprep.subr.mxu0 0.0
    %2332 = vmatpush1.msra.mxu0 0.0
    %2333 = vmatprep.subr.mxu0 0.0
    %2334 = vmatpush1.msra.mxu0 0.0
    %2335 = vmatprep.subr.mxu0 0.0
    %2336 = vmatpush1.msra.mxu0 0.0
    %2337 = vmatprep.subr.mxu0 0.0
    %2338 = vmatpush1.msra.mxu0 0.0
    %2339 = vmatprep.subr.mxu0 0.0
    %2340 = vmatpush1.msra.mxu0 0.0
    %2341 = vmatprep.subr.mxu0 0.0
    %2342 = vmatpush1.msra.mxu0 0.0
    %2343 = vmatprep.mubr.f32.mxu0 0.0
    %2344 = vmatmul.mubr.f32.gmra.mrb[0].mxu0 %v2268
    %v2345 = vpop.f32.mrb[0].mxu0
    %v2346 = vadd.f32 0.0, %v2345
    %v2347 = vpop.f32.mrb[0].mxu0
    %2348 = vmatprep.mubr.f32.mxu0 0.0
    %2349 = vmatmul.mubr.f32.gmra.mrb[0].mxu0 %v2271
    %v2350 = vpop.f32.mrb[0].mxu0
    %v2351 = vadd.f32 0.0, %v2350
    %v2352 = vpop.f32.mrb[0].mxu0
    %2353 = vmatprep.mubr.f32.mxu0 0.0
    %2354 = vmatmul.mubr.f32.gmra.mrb[0].mxu0 %v2274
    %v2355 = vpop.f32.mrb[0].mxu0
    %v2356 = vadd.f32 0.0, %v2355
    %v2357 = vpop.f32.mrb[0].mxu0
    %2358 = vmatprep.mubr.f32.mxu0 0.0
    %2359 = vmatmul.mubr.f32.gmra.mrb[0].mxu0 %v2277
    %v2360 = vpop.f32.mrb[0].mxu0
    %v2361 = vadd.f32 0.0, %v2360
    %v2362 = vpop.f32.mrb[0].mxu0
    %2363 = vdwg.mxu0
    %v2364 = vadd.f32 %v74, %v2346
    %v2365 = vadd.f32 %v75, %v2351
    %v2366 = vadd.f32 %v76, %v2356
    %v2367 = vadd.f32 %v77, %v2361
    %v2368 = vmul.f32 %v2364, %v2364
    %v2369 = vmul.f32 %v2365, %v2365
    %v2370 = vmul.f32 %v2366, %v2366
    %v2371 = vmul.f32 %v2367, %v2367
    %v2372 = vsel %vm82, %v2368, 0.0
    %2373 = vadd.xlane.f32.xlu0 %v2372
    %v2374 = vpop.xlane.xlu0 %2373
    %v2375 = vsel %vm82, %v2369, 0.0
    %2376 = vadd.xlane.f32.xlu0 %v2375
    %v2377 = vpop.xlane.xlu0 %2376
    %v2378 = vsel %vm82, %v2370, 0.0
    %2379 = vadd.xlane.f32.xlu0 %v2378
    %v2380 = vpop.xlane.xlu0 %2379
    %v2381 = vsel %vm82, %v2371, 0.0
    %2382 = vadd.xlane.f32.xlu0 %v2381
    %v2383 = vpop.xlane.xlu0 %2382
    %v2384 = vmul.f32 %v2374, %v95
    %v2385 = vmul.f32 %v2377, %v95
    %v2386 = vmul.f32 %v2380, %v95
    %v2387 = vmul.f32 %v2383, %v95
    %v2388 = vld [vmem:[%s6] sm:$0x1]
    %v2389 = vadd.f32 %v2384, 1e-06
    %v2390 = vadd.f32 %v2385, 1e-06
    %v2391 = vadd.f32 %v2386, 1e-06
    %v2392 = vadd.f32 %v2387, 1e-06
    %v2393 = vrsqrt.pop %v2389
    %v2394 = vrsqrt.pop %v2390
    %v2395 = vrsqrt.pop %v2391
    %v2396 = vrsqrt.pop %v2392
    %v2397 = vmul.f32 %v2364, %v2393
    %v2398 = vmul.f32 %v2365, %v2394
    %v2399 = vmul.f32 %v2366, %v2395
    %v2400 = vmul.f32 %v2367, %v2396
    %v2402 = vlaneseq
    %v2403 = vshrl.u32 %v2402, 7
    %v2404 = vsub.s32 0, %v2403
    %v2405 = vrot.slane %v2388, %v2404
    %v2407 = vmul.f32 %v2405, %v2397
    %v2408 = vmul.f32 %v2405, %v2398
    %v2409 = vmul.f32 %v2405, %v2399
    %v2410 = vmul.f32 %v2405, %v2400
    %v2411 = vld [vmem:[%s3] sm:$0xff]
    %v2412 = vld [vmem:[%s3 + $0x8] sm:$0xff]
    %v2413 = vld [vmem:[%s3 + $0x10] sm:$0xff]
    %v2414 = vld [vmem:[%s3 + $0x18] sm:$0xff]
    %v2415 = vld [vmem:[%s3 + $0x20] sm:$0xff]
    %v2416 = vld [vmem:[%s3 + $0x28] sm:$0xff]
    %v2417 = vld [vmem:[%s3 + $0x30] sm:$0xff]
    %v2418 = vld [vmem:[%s3 + $0x38] sm:$0xff]
    %v2419 = vld [vmem:[%s3 + $0x40] sm:$0xff]
    %v2420 = vld [vmem:[%s3 + $0x48] sm:$0xff]
    %v2421 = vld [vmem:[%s3 + $0x50] sm:$0xff]
    %v2422 = vld [vmem:[%s3 + $0x58] sm:$0xff]
    %v2423 = vld [vmem:[%s3 + $0x60] sm:$0xff]
    %v2424 = vld [vmem:[%s3 + $0x68] sm:$0xff]
    %v2425 = vld [vmem:[%s3 + $0x70] sm:$0xff]
    %v2426 = vld [vmem:[%s3 + $0x78] sm:$0xff]
    %v2428 = vsel %vm82, %v2407, 0
    %v2431 = vsel %vm82, %v2408, 0
    %v2434 = vsel %vm82, %v2409, 0
    %v2437 = vsel %vm82, %v2410, 0
    %2439 = vmatprep.subr.mxu0 %v2412
    %2440 = vmatpush1.msra.mxu0 %v2411
    %2441 = vmatprep.subr.mxu0 %v2414
    %2442 = vmatpush1.msra.mxu0 %v2413
    %2443 = vmatprep.subr.mxu0 %v2416
    %2444 = vmatpush1.msra.mxu0 %v2415
    %2445 = vmatprep.subr.mxu0 %v2418
    %2446 = vmatpush1.msra.mxu0 %v2417
    %2447 = vmatprep.subr.mxu0 %v2420
    %2448 = vmatpush1.msra.mxu0 %v2419
    %2449 = vmatprep.subr.mxu0 %v2422
    %2450 = vmatpush1.msra.mxu0 %v2421
    %2451 = vmatprep.subr.mxu0 %v2424
    %2452 = vmatpush1.msra.mxu0 %v2423
    %2453 = vmatprep.subr.mxu0 %v2426
    %2454 = vmatpush1.msra.mxu0 %v2425
    %2455 = vmatprep.subr.mxu0 0.0
    %2456 = vmatpush1.msra.mxu0 0.0
    %2457 = vmatprep.subr.mxu0 0.0
    %2458 = vmatpush1.msra.mxu0 0.0
    %2459 = vmatprep.subr.mxu0 0.0
    %2460 = vmatpush1.msra.mxu0 0.0
    %2461 = vmatprep.subr.mxu0 0.0
    %2462 = vmatpush1.msra.mxu0 0.0
    %2463 = vmatprep.subr.mxu0 0.0
    %2464 = vmatpush1.msra.mxu0 0.0
    %2465 = vmatprep.subr.mxu0 0.0
    %2466 = vmatpush1.msra.mxu0 0.0
    %2467 = vmatprep.subr.mxu0 0.0
    %2468 = vmatpush1.msra.mxu0 0.0
    %2469 = vmatprep.subr.mxu0 0.0
    %2470 = vmatpush1.msra.mxu0 0.0
    %2471 = vmatprep.subr.mxu0 0.0
    %2472 = vmatpush1.msra.mxu0 0.0
    %2473 = vmatprep.subr.mxu0 0.0
    %2474 = vmatpush1.msra.mxu0 0.0
    %2475 = vmatprep.subr.mxu0 0.0
    %2476 = vmatpush1.msra.mxu0 0.0
    %2477 = vmatprep.subr.mxu0 0.0
    %2478 = vmatpush1.msra.mxu0 0.0
    %2479 = vmatprep.subr.mxu0 0.0
    %2480 = vmatpush1.msra.mxu0 0.0
    %2481 = vmatprep.subr.mxu0 0.0
    %2482 = vmatpush1.msra.mxu0 0.0
    %2483 = vmatprep.subr.mxu0 0.0
    %2484 = vmatpush1.msra.mxu0 0.0
    %2485 = vmatprep.subr.mxu0 0.0
    %2486 = vmatpush1.msra.mxu0 0.0
    %2487 = vmatprep.subr.mxu0 0.0
    %2488 = vmatpush1.msra.mxu0 0.0
    %2489 = vmatprep.subr.mxu0 0.0
    %2490 = vmatpush1.msra.mxu0 0.0
    %2491 = vmatprep.subr.mxu0 0.0
    %2492 = vmatpush1.msra.mxu0 0.0
    %2493 = vmatprep.subr.mxu0 0.0
    %2494 = vmatpush1.msra.mxu0 0.0
    %2495 = vmatprep.subr.mxu0 0.0
    %2496 = vmatpush1.msra.mxu0 0.0
    %2497 = vmatprep.subr.mxu0 0.0
    %2498 = vmatpush1.msra.mxu0 0.0
    %2499 = vmatprep.subr.mxu0 0.0
    %2500 = vmatpush1.msra.mxu0 0.0
    %2501 = vmatprep.subr.mxu0 0.0
    %2502 = vmatpush1.msra.mxu0 0.0
    %2503 = vmatprep.mubr.f32.mxu0 0.0
    %2504 = vmatmul.mubr.f32.gmra.mrb[0].mxu0 %v2428
    %v2505 = vpop.f32.mrb[0].mxu0
    %v2506 = vadd.f32 0.0, %v2505
    %v2507 = vpop.f32.mrb[0].mxu0
    %v2508 = vadd.f32 0.0, %v2507
    %2509 = vmatprep.mubr.f32.mxu0 0.0
    %2510 = vmatmul.mubr.f32.gmra.mrb[0].mxu0 %v2431
    %v2511 = vpop.f32.mrb[0].mxu0
    %v2512 = vadd.f32 0.0, %v2511
    %v2513 = vpop.f32.mrb[0].mxu0
    %v2514 = vadd.f32 0.0, %v2513
    %2515 = vmatprep.mubr.f32.mxu0 0.0
    %2516 = vmatmul.mubr.f32.gmra.mrb[0].mxu0 %v2434
    %v2517 = vpop.f32.mrb[0].mxu0
    %v2518 = vadd.f32 0.0, %v2517
    %v2519 = vpop.f32.mrb[0].mxu0
    %v2520 = vadd.f32 0.0, %v2519
    %2521 = vmatprep.mubr.f32.mxu0 0.0
    %2522 = vmatmul.mubr.f32.gmra.mrb[0].mxu0 %v2437
    %v2523 = vpop.f32.mrb[0].mxu0
    %v2524 = vadd.f32 0.0, %v2523
    %v2525 = vpop.f32.mrb[0].mxu0
    %v2526 = vadd.f32 0.0, %v2525
    %2527 = vdwg.mxu0
    %v2528 = vmax.f32 %v2506, 0.0
    %v2529 = vmax.f32 %v2512, 0.0
    %v2530 = vmax.f32 %v2518, 0.0
    %v2531 = vmax.f32 %v2524, 0.0
    %v2532 = vmul.f32 %v2528, %v2508
    %v2533 = vmul.f32 %v2529, %v2514
    %v2534 = vmul.f32 %v2530, %v2520
    %v2535 = vmul.f32 %v2531, %v2526
    %v2536 = vld [vmem:[%s4] sm:$0xff]
    %v2537 = vld [vmem:[%s4 + $0x8] sm:$0xff]
    %v2538 = vld [vmem:[%s4 + $0x10] sm:$0xff]
    %v2539 = vld [vmem:[%s4 + $0x18] sm:$0xff]
    %v2540 = vld [vmem:[%s4 + $0x20] sm:$0xff]
    %v2541 = vld [vmem:[%s4 + $0x28] sm:$0xff]
    %v2542 = vld [vmem:[%s4 + $0x30] sm:$0xff]
    %v2543 = vld [vmem:[%s4 + $0x38] sm:$0xff]
    %v2544 = vld [vmem:[%s4 + $0x40] sm:$0xff]
    %v2545 = vld [vmem:[%s4 + $0x48] sm:$0xff]
    %v2546 = vld [vmem:[%s4 + $0x50] sm:$0xff]
    %v2547 = vld [vmem:[%s4 + $0x58] sm:$0xff]
    %v2548 = vld [vmem:[%s4 + $0x60] sm:$0xff]
    %v2549 = vld [vmem:[%s4 + $0x68] sm:$0xff]
    %v2550 = vld [vmem:[%s4 + $0x70] sm:$0xff]
    %v2551 = vld [vmem:[%s4 + $0x78] sm:$0xff]
    %2552 = vmatprep.subr.mxu0 0.0
    %2553 = vmatpush1.msra.mxu0 %v2536
    %2554 = vmatprep.subr.mxu0 0.0
    %2555 = vmatpush1.msra.mxu0 %v2537
    %2556 = vmatprep.subr.mxu0 0.0
    %2557 = vmatpush1.msra.mxu0 %v2538
    %2558 = vmatprep.subr.mxu0 0.0
    %2559 = vmatpush1.msra.mxu0 %v2539
    %2560 = vmatprep.subr.mxu0 0.0
    %2561 = vmatpush1.msra.mxu0 %v2540
    %2562 = vmatprep.subr.mxu0 0.0
    %2563 = vmatpush1.msra.mxu0 %v2541
    %2564 = vmatprep.subr.mxu0 0.0
    %2565 = vmatpush1.msra.mxu0 %v2542
    %2566 = vmatprep.subr.mxu0 0.0
    %2567 = vmatpush1.msra.mxu0 %v2543
    %2568 = vmatprep.subr.mxu0 0.0
    %2569 = vmatpush1.msra.mxu0 %v2544
    %2570 = vmatprep.subr.mxu0 0.0
    %2571 = vmatpush1.msra.mxu0 %v2545
    %2572 = vmatprep.subr.mxu0 0.0
    %2573 = vmatpush1.msra.mxu0 %v2546
    %2574 = vmatprep.subr.mxu0 0.0
    %2575 = vmatpush1.msra.mxu0 %v2547
    %2576 = vmatprep.subr.mxu0 0.0
    %2577 = vmatpush1.msra.mxu0 %v2548
    %2578 = vmatprep.subr.mxu0 0.0
    %2579 = vmatpush1.msra.mxu0 %v2549
    %2580 = vmatprep.subr.mxu0 0.0
    %2581 = vmatpush1.msra.mxu0 %v2550
    %2582 = vmatprep.subr.mxu0 0.0
    %2583 = vmatpush1.msra.mxu0 %v2551
    %2584 = vmatprep.subr.mxu0 0.0
    %2585 = vmatpush1.msra.mxu0 0.0
    %2586 = vmatprep.subr.mxu0 0.0
    %2587 = vmatpush1.msra.mxu0 0.0
    %2588 = vmatprep.subr.mxu0 0.0
    %2589 = vmatpush1.msra.mxu0 0.0
    %2590 = vmatprep.subr.mxu0 0.0
    %2591 = vmatpush1.msra.mxu0 0.0
    %2592 = vmatprep.subr.mxu0 0.0
    %2593 = vmatpush1.msra.mxu0 0.0
    %2594 = vmatprep.subr.mxu0 0.0
    %2595 = vmatpush1.msra.mxu0 0.0
    %2596 = vmatprep.subr.mxu0 0.0
    %2597 = vmatpush1.msra.mxu0 0.0
    %2598 = vmatprep.subr.mxu0 0.0
    %2599 = vmatpush1.msra.mxu0 0.0
    %2600 = vmatprep.subr.mxu0 0.0
    %2601 = vmatpush1.msra.mxu0 0.0
    %2602 = vmatprep.subr.mxu0 0.0
    %2603 = vmatpush1.msra.mxu0 0.0
    %2604 = vmatprep.subr.mxu0 0.0
    %2605 = vmatpush1.msra.mxu0 0.0
    %2606 = vmatprep.subr.mxu0 0.0
    %2607 = vmatpush1.msra.mxu0 0.0
    %2608 = vmatprep.subr.mxu0 0.0
    %2609 = vmatpush1.msra.mxu0 0.0
    %2610 = vmatprep.subr.mxu0 0.0
    %2611 = vmatpush1.msra.mxu0 0.0
    %2612 = vmatprep.subr.mxu0 0.0
    %2613 = vmatpush1.msra.mxu0 0.0
    %2614 = vmatprep.subr.mxu0 0.0
    %2615 = vmatpush1.msra.mxu0 0.0
    %2616 = vmatprep.mubr.f32.mxu0 0.0
    %2617 = vmatmul.mubr.f32.gmra.mrb[0].mxu0 %v2532
    %v2618 = vpop.f32.mrb[0].mxu0
    %v2619 = vadd.f32 0.0, %v2618
    %v2620 = vpop.f32.mrb[0].mxu0
    %2621 = vmatprep.mubr.f32.mxu0 0.0
    %2622 = vmatmul.mubr.f32.gmra.mrb[0].mxu0 %v2533
    %v2623 = vpop.f32.mrb[0].mxu0
    %v2624 = vadd.f32 0.0, %v2623
    %v2625 = vpop.f32.mrb[0].mxu0
    %2626 = vmatprep.mubr.f32.mxu0 0.0
    %2627 = vmatmul.mubr.f32.gmra.mrb[0].mxu0 %v2534
    %v2628 = vpop.f32.mrb[0].mxu0
    %v2629 = vadd.f32 0.0, %v2628
    %v2630 = vpop.f32.mrb[0].mxu0
    %2631 = vmatprep.mubr.f32.mxu0 0.0
    %2632 = vmatmul.mubr.f32.gmra.mrb[0].mxu0 %v2535
    %v2633 = vpop.f32.mrb[0].mxu0
    %v2634 = vadd.f32 0.0, %v2633
    %v2635 = vpop.f32.mrb[0].mxu0
    %2636 = vdwg.mxu0
    %v2637 = vadd.f32 %v2364, %v2619
    %v2638 = vadd.f32 %v2365, %v2624
    %v2639 = vadd.f32 %v2366, %v2629
    %v2640 = vadd.f32 %v2367, %v2634
    %2641 = vst.msk [vmem:[#allocation8] sm:$0xff] %vm82, %v2637
    %2642 = vst.msk [vmem:[#allocation8 + $0x8] sm:$0xff] %vm82, %v2638
    %2643 = vst.msk [vmem:[#allocation8 + $0x10] sm:$0xff] %vm82, %v2639
    %2644 = vst.msk [vmem:[#allocation8 + $0x18] sm:$0xff] %vm82, %v2640
    // Predicated region
    $region50: #{tpu_custom_call.1} parent=1 // pred_check
      _
    $region51: #{tpu_custom_call.1} parent=1 // pred_check_branch
      %2646 = sbr.rel (0) target = $region53
    $region52: #{tpu_custom_call.1} parent=1 // pred_region
      %s2648 = ssub.s32 512, 512
      %2649 = vsyncadd [#allocation4], %s2648
      %s2650 = sshll.u32 [#allocation8], 4
      %s2651 = int_to_ptr.vmem [resolvable:$true] %s2650
      %2656 = dma.vmem_to_hbm [thread:$0]  %s2651, 512, %s9, [#allocation4], 128, 128, 8
    $region53: #{tpu_custom_call.1} parent=1 // pred_fallthru
      _
    // Predicated region
    $region54: #{tpu_custom_call.1} parent=1 // pred_check
      _
    $region55: #{tpu_custom_call.1} parent=1 // pred_check_branch
      %2658 = sbr.rel (0) target = $region57
    $region56: #{tpu_custom_call.1} parent=1 // pred_region
      %2659 = dma.done [#allocation4], 512
    $region57: #{tpu_custom_call.1} parent=1 // pred_fallthru
      _
    %2660 = vsyncpa [#allocation3], 1
    %2661 = vsyncpa [#allocation6], 1
    %2662 = vsyncpa [#allocation4], 1

</llo_original>
